<compile_context>
chip_gen: v7x
topology: tpu7x:2x2x1
jax: 0.10.0
libtpu: 0.0.40
codegen_flags: <defaults>
</compile_context>

<pallas_src>
import jax
import jax.numpy as jnp
from jax.experimental import pallas as pl
from jax.experimental.pallas import tpu as pltpu


_LANE = 128
_SUBLANE = 8


def _round_up(x, m):
    return ((x + m - 1) // m) * m


def _edge_scorer_kernel(hu_ref, hv_ref, wu_ref, wv_ref, b_ref, out_ref):
    # hu_ref:  [T, F]  gathered source-node features for this edge tile
    # hv_ref:  [T, F]  gathered destination-node features
    # wu_ref:  [F, C]  resident W[:, :F].T
    # wv_ref:  [F, C]  resident W[:, F:].T
    # b_ref:   [1, C]  resident bias (f32)
    # out_ref: [T, C]  edge scores
    s = jnp.dot(hu_ref[...], wu_ref[...], preferred_element_type=jnp.float32)
    s = s + jnp.dot(hv_ref[...], wv_ref[...], preferred_element_type=jnp.float32)
    out_ref[...] = (s + b_ref[...]).astype(out_ref.dtype)


def mlp_predictor_forward(h, src_ids, dst_ids, weight, bias, *,
                          edge_tile=512, vmem_budget_bytes=8 << 20):
    """Pallas implementation of MLPPredictor.forward.

    h:       [N, F]   node features
    src_ids: [E]      edge source node indices
    dst_ids: [E]      edge destination node indices
    weight:  [C, 2F]  nn.Linear weight (PyTorch convention)
    bias:    [C]      nn.Linear bias
    returns: [E, C]   edge scores
    """
    N, F = h.shape
    C = weight.shape[0]
    E = src_ids.shape[0]
    assert weight.shape == (C, 2 * F)
    assert E > 0

    elt = jnp.dtype(h.dtype).itemsize

    # Cap the edge tile so double-buffered input/output tiles stay inside a
    # conservative VMEM budget (safe for v7x's smaller VMEM as well as v5e/v6e).
    bytes_per_edge_row = 2 * (2 * F * elt) + 2 * (C * 4)
    max_tile = max(_SUBLANE,
                   (vmem_budget_bytes // bytes_per_edge_row) // _SUBLANE * _SUBLANE)
    t = max(_SUBLANE, (min(edge_tile, max_tile) // _SUBLANE) * _SUBLANE)

    # Wrapper glue for edges.src['h'] / edges.dst['h'] (XLA gathers).
    h_u = h[src_ids]                                   # [E, F]
    h_v = h[dst_ids]                                   # [E, F]

    # Pad edge count to a tile multiple; padded rows are sliced off afterwards.
    e_pad = _round_up(E, t)
    if e_pad != E:
        pad = ((0, e_pad - E), (0, 0))
        h_u = jnp.pad(h_u, pad)
        h_v = jnp.pad(h_v, pad)

    # Split, transposed Linear params (kept VMEM-resident across the grid).
    w_u = weight[:, :F].T.astype(h.dtype)              # [F, C]
    w_v = weight[:, F:].T.astype(h.dtype)              # [F, C]
    b2d = bias.astype(jnp.float32).reshape(1, C)       # [1, C]

    grid = (e_pad // t,)

    vmem_needed = (2 * 2 * t * F * elt) + (2 * t * C * elt) \
        + (2 * F * C * elt) + (C * 4)
    vmem_limit = int(min(max(4 * vmem_needed, 8 << 20), 32 << 20))

    out = pl.pallas_call(
        _edge_scorer_kernel,
        out_shape=jax.ShapeDtypeStruct((e_pad, C), h.dtype),
        grid_spec=pltpu.PrefetchScalarGridSpec(
            num_scalar_prefetch=0,
            grid=grid,
            in_specs=[
                pl.BlockSpec((t, F), lambda i: (i, 0)),    # h[src] tile
                pl.BlockSpec((t, F), lambda i: (i, 0)),    # h[dst] tile
                pl.BlockSpec((F, C), lambda i: (0, 0)),    # W_u.T (resident)
                pl.BlockSpec((F, C), lambda i: (0, 0)),    # W_v.T (resident)
                pl.BlockSpec((1, C), lambda i: (0, 0)),    # bias (resident)
            ],
            out_specs=pl.BlockSpec((t, C), lambda i: (i, 0)),
        ),
        compiler_params=pltpu.CompilerParams(
            dimension_semantics=("parallel",),
            vmem_limit_bytes=vmem_limit,
        ),
    )(h_u, h_v, w_u, w_v, b2d)

    return out[:E]


if __name__ == "__main__":
    key = jax.random.PRNGKey(0)

    # Small synthetic "graph": N nodes, E edges, in_features=F, out_classes=C.
    # E is deliberately NOT a multiple of the edge tile to exercise padding.
    N, F, C, E = 64, 32, 8, 1000

    k1, k2, k3, k4, k5 = jax.random.split(key, 5)
    h = jax.random.normal(k1, (N, F), dtype=jnp.float32)
    src_ids = jax.random.randint(k2, (E,), 0, N, dtype=jnp.int32)
    dst_ids = jax.random.randint(k3, (E,), 0, N, dtype=jnp.int32)

    # Deterministic Linear(2F, C) params (PyTorch-style uniform init bounds).
    bound = 1.0 / jnp.sqrt(2.0 * F)
    weight = jax.random.uniform(k4, (C, 2 * F), dtype=jnp.float32,
                                minval=-bound, maxval=bound)
    bias = jax.random.uniform(k5, (C,), dtype=jnp.float32,
                              minval=-bound, maxval=bound)

    score = mlp_predictor_forward(h, src_ids, dst_ids, weight, bias)
    score = jax.block_until_ready(score)

    # Reference check against plain JAX (same math as the PyTorch module).
    ref = jnp.concatenate([h[src_ids], h[dst_ids]], axis=1) @ weight.T + bias
    assert score.shape == (E, C)
    assert jnp.allclose(score, ref, atol=1e-4, rtol=1e-4)

    print("KERNEL_OK")
</pallas_src>

<mosaic_0001>
module attributes {stable_mosaic.version = 11 : i64} {
  func.func @_edge_scorer_kernel(%arg0: i32, %arg1: memref<512x32xf32, #tpu.memory_space<vmem>>, %arg2: memref<512x32xf32, #tpu.memory_space<vmem>>, %arg3: memref<32x8xf32, #tpu.memory_space<vmem>>, %arg4: memref<32x8xf32, #tpu.memory_space<vmem>>, %arg5: memref<1x8xf32, #tpu.memory_space<vmem>>, %arg6: memref<512x8xf32, #tpu.memory_space<vmem>>) attributes {dimension_semantics = [#tpu.dimension_semantics<parallel>], iteration_bounds = array<i64: 2>, scalar_prefetch = 0 : i64, scratch_operands = 0 : i64, tpu.core_type = #tpu.core_type<tc>, window_params = [{transform_indices = @transform_0, window_bounds = array<i64: 512, 32>}, {transform_indices = @transform_1, window_bounds = array<i64: 512, 32>}, {pipeline_mode = #tpu.pipeline_mode<synchronous>, transform_indices = @transform_2, window_bounds = array<i64: 32, 8>}, {pipeline_mode = #tpu.pipeline_mode<synchronous>, transform_indices = @transform_3, window_bounds = array<i64: 32, 8>}, {pipeline_mode = #tpu.pipeline_mode<synchronous>, transform_indices = @transform_4, window_bounds = array<i64: 1, 8>}, {transform_indices = @transform_5, window_bounds = array<i64: 512, 8>}]} {
    %c0 = arith.constant 0 : index
    %c0_0 = arith.constant 0 : index
    %0 = vector.load %arg1[%c0, %c0_0] : memref<512x32xf32, #tpu.memory_space<vmem>>, vector<512x32xf32>
    %c0_1 = arith.constant 0 : index
    %c0_2 = arith.constant 0 : index
    %1 = vector.load %arg3[%c0_1, %c0_2] : memref<32x8xf32, #tpu.memory_space<vmem>>, vector<32x8xf32>
    %cst = arith.constant dense<0.000000e+00> : vector<512x8xf32>
    %2 = tpu.matmul %0, %1, %cst {dimension_numbers = #tpu.dot_dimension_numbers<[1], [0], [0], [1], [0, 0, 1, 1], [], []>} : vector<512x32xf32>, vector<32x8xf32>, vector<512x8xf32> -> vector<512x8xf32>
    %c0_3 = arith.constant 0 : index
    %c0_4 = arith.constant 0 : index
    %3 = vector.load %arg2[%c0_3, %c0_4] : memref<512x32xf32, #tpu.memory_space<vmem>>, vector<512x32xf32>
    %c0_5 = arith.constant 0 : index
    %c0_6 = arith.constant 0 : index
    %4 = vector.load %arg4[%c0_5, %c0_6] : memref<32x8xf32, #tpu.memory_space<vmem>>, vector<32x8xf32>
    %cst_7 = arith.constant dense<0.000000e+00> : vector<512x8xf32>
    %5 = tpu.matmul %3, %4, %cst_7 {dimension_numbers = #tpu.dot_dimension_numbers<[1], [0], [0], [1], [0, 0, 1, 1], [], []>} : vector<512x32xf32>, vector<32x8xf32>, vector<512x8xf32> -> vector<512x8xf32>
    %6 = arith.addf %2, %5 : vector<512x8xf32>
    %c0_8 = arith.constant 0 : index
    %c0_9 = arith.constant 0 : index
    %7 = vector.load %arg5[%c0_8, %c0_9] : memref<1x8xf32, #tpu.memory_space<vmem>>, vector<1x8xf32>
    %8 = vector.broadcast %7 : vector<1x8xf32> to vector<512x8xf32>
    %9 = arith.addf %6, %8 : vector<512x8xf32>
    %c0_10 = arith.constant 0 : index
    %c0_11 = arith.constant 0 : index
    %10 = vector.load %arg6[%c0_10, %c0_11] : memref<512x8xf32, #tpu.memory_space<vmem>>, vector<512x8xf32>
    tpu.vector_store %arg6[%c0_10, %c0_11], %9 {strides = array<i32>} : memref<512x8xf32, #tpu.memory_space<vmem>>, vector<512x8xf32>,
    return
  }
  func.func @transform_0(%arg0: i32) -> (i32, i32) {
    %c0_i32 = arith.constant 0 : i32
    %c0_i32_0 = arith.constant 0 : i32
    return %arg0, %c0_i32 : i32, i32
  }
  func.func @transform_1(%arg0: i32) -> (i32, i32) {
    %c0_i32 = arith.constant 0 : i32
    %c0_i32_0 = arith.constant 0 : i32
    return %arg0, %c0_i32 : i32, i32
  }
  func.func @transform_2(%arg0: i32) -> (i32, i32) {
    %c0_i32 = arith.constant 0 : i32
    %c0_i32_0 = arith.constant 0 : i32
    %c0_i32_1 = arith.constant 0 : i32
    return %c0_i32, %c0_i32_0 : i32, i32
  }
  func.func @transform_3(%arg0: i32) -> (i32, i32) {
    %c0_i32 = arith.constant 0 : i32
    %c0_i32_0 = arith.constant 0 : i32
    %c0_i32_1 = arith.constant 0 : i32
    return %c0_i32, %c0_i32_0 : i32, i32
  }
  func.func @transform_4(%arg0: i32) -> (i32, i32) {
    %c0_i32 = arith.constant 0 : i32
    %c0_i32_0 = arith.constant 0 : i32
    %c0_i32_1 = arith.constant 0 : i32
    return %c0_i32, %c0_i32_0 : i32, i32
  }
  func.func @transform_5(%arg0: i32) -> (i32, i32) {
    %c0_i32 = arith.constant 0 : i32
    %c0_i32_0 = arith.constant 0 : i32
    return %arg0, %c0_i32 : i32, i32
  }
}

</mosaic_0001>

<llo_original>
// kernel: tpu_custom_call.1
$region0: #{tpu_custom_call.1}
  #allocation0 [shape = 'u32[]', space=smem, size = 0x4, offset = 0x4, fixed_abs, tag = 'smem constant byte address 0x4 - core index']
  #allocation1 [shape = 'u32[144,128]{1,0:T(1,128)}', space=vmem, size = 0x12000, scoped, tag = 'internal scratch']
  %s0 = inlined_call_operand.vmem [shape: f32[1024,32], index: 0, kind: input, shape index: {}]
  %s1 = inlined_call_operand.vmem [shape: f32[1024,32], index: 1, kind: input, shape index: {}]
  %s2 = inlined_call_operand.vmem [shape: f32[32,8], index: 2, kind: input, shape index: {}]
  %s3 = inlined_call_operand.vmem [shape: f32[32,8], index: 3, kind: input, shape index: {}]
  %s4 = inlined_call_operand.vmem [shape: f32[1,8], index: 4, kind: input, shape index: {}]
  %s5 = inlined_call_operand.vmem [shape: f32[1024,8], index: 5, kind: output, shape index: {}]
  %s6 = sld [smem:[#allocation0]]
  $region53: #{tpu_custom_call.1} parent=0
    _
  %s8 = ssub.s32 1, %s6
  %s9 = scalar_select 0, %s8, %s6
  loop: start=0, step=1, limit=4
  $region2: #{tpu_custom_call.1} parent=0 // loop_pre_header
    _
  $region3: #{tpu_custom_call.1} parent=0 // loop_header
    %s11 = sphi 0, %s15
    %p12 = scmp.ge.s32.totalorder %s11, 4
    %s21 = sphi 0, %s23
    %s24 = sphi 0, %s21
    %s25 = sphi 0, %s24
    %s41 = sphi 0, %s25
    %s47 = sphi 0, %s49
    %s50 = sphi 0, %s47
    %s51 = sphi 0, %s50
    %s67 = sphi 0, %s51
    %s71 = sphi 0, %s71
    %s73 = sphi 0, %s71
    %s74 = sphi 0, %s73
    %s88 = sphi 0, %s74
    %s92 = sphi 0, %s92
    %s94 = sphi 0, %s92
    %s95 = sphi 0, %s94
    %s109 = sphi 0, %s95
    %s113 = sphi 0, %s113
    %s115 = sphi 0, %s113
    %s116 = sphi 0, %s115
    %s130 = sphi 0, %s116
    %s136 = sphi 0, %s138
    %s139 = sphi 0, %s136
    %s140 = sphi 0, %s139
    %s156 = sphi 0, %s140
  $region4: #{tpu_custom_call.1} parent=0 // loop_header_branch
    %14 = sbr.rel (%p12) target = $region8
  $region5: #{tpu_custom_call.1} parent=0 // loop_body
    %s16 = ssub.s32 %s11, 1
    %s17 = ssub.s32 %s11, 2
    %s18 = sadd.s32 %s11, 1
    %s19 = ssub.s32 %s11, %s18
    %p20 = scmp.eq.s32.totalorder %s19, 0
    %s22 = sadd.s32 %s21, 1
    %s23 = scalar_select %p20, %s21, %s22
    %p26 = pneg %p20
    %p27 = scmp.eq.s32.totalorder %s11, 1
    %p28 = por %p26, %p27
    %p29 = scmp.ne.s32.totalorder %s21, %s24
    %p30 = scmp.eq.s32.totalorder %s11, 0
    %p31 = por %p29, %p30
    %p32 = scmp.ne.s32.totalorder %s21, %s24
    %p33 = scmp.eq.s32.totalorder %s16, 1
    %p34 = por %p32, %p33
    %p35 = scmp.ne.s32.totalorder %s24, %s25
    %p36 = scmp.eq.s32.totalorder %s16, 0
    %p37 = por %p35, %p36
    %p38 = scmp.ne.s32.totalorder %s24, %s25
    %p39 = scmp.eq.s32.totalorder %s17, 1
    %p40 = por %p38, %p39
    %p42 = scmp.ne.s32.totalorder %s25, %s41
    %p43 = scmp.eq.s32.totalorder %s17, 0
    %p44 = por %p42, %p43
    %s45 = ssub.s32 %s11, %s18
    %p46 = scmp.eq.s32.totalorder %s45, 0
    %s48 = sadd.s32 %s47, 1
    %s49 = scalar_select %p46, %s47, %s48
    %p52 = pneg %p46
    %p53 = scmp.eq.s32.totalorder %s11, 1
    %p54 = por %p52, %p53
    %p55 = scmp.ne.s32.totalorder %s47, %s50
    %p56 = scmp.eq.s32.totalorder %s11, 0
    %p57 = por %p55, %p56
    %p58 = scmp.ne.s32.totalorder %s47, %s50
    %p59 = scmp.eq.s32.totalorder %s16, 1
    %p60 = por %p58, %p59
    %p61 = scmp.ne.s32.totalorder %s50, %s51
    %p62 = scmp.eq.s32.totalorder %s16, 0
    %p63 = por %p61, %p62
    %p64 = scmp.ne.s32.totalorder %s50, %s51
    %p65 = scmp.eq.s32.totalorder %s17, 1
    %p66 = por %p64, %p65
    %p68 = scmp.ne.s32.totalorder %s51, %s67
    %p69 = scmp.eq.s32.totalorder %s17, 0
    %p70 = por %p68, %p69
    %s72 = sadd.s32 %s71, 1
    %p75 = scmp.eq.s32.totalorder %s11, 1
    %p76 = scmp.ne.s32.totalorder %s71, %s73
    %p77 = scmp.eq.s32.totalorder %s11, 0
    %p78 = por %p76, %p77
    %p79 = scmp.ne.s32.totalorder %s71, %s73
    %p80 = scmp.eq.s32.totalorder %s16, 1
    %p81 = por %p79, %p80
    %p82 = scmp.ne.s32.totalorder %s73, %s74
    %p83 = scmp.eq.s32.totalorder %s16, 0
    %p84 = por %p82, %p83
    %p85 = scmp.ne.s32.totalorder %s73, %s74
    %p86 = scmp.eq.s32.totalorder %s17, 1
    %p87 = por %p85, %p86
    %p89 = scmp.ne.s32.totalorder %s74, %s88
    %p90 = scmp.eq.s32.totalorder %s17, 0
    %p91 = por %p89, %p90
    %s93 = sadd.s32 %s92, 1
    %p96 = scmp.eq.s32.totalorder %s11, 1
    %p97 = scmp.ne.s32.totalorder %s92, %s94
    %p98 = scmp.eq.s32.totalorder %s11, 0
    %p99 = por %p97, %p98
    %p100 = scmp.ne.s32.totalorder %s92, %s94
    %p101 = scmp.eq.s32.totalorder %s16, 1
    %p102 = por %p100, %p101
    %p103 = scmp.ne.s32.totalorder %s94, %s95
    %p104 = scmp.eq.s32.totalorder %s16, 0
    %p105 = por %p103, %p104
    %p106 = scmp.ne.s32.totalorder %s94, %s95
    %p107 = scmp.eq.s32.totalorder %s17, 1
    %p108 = por %p106, %p107
    %p110 = scmp.ne.s32.totalorder %s95, %s109
    %p111 = scmp.eq.s32.totalorder %s17, 0
    %p112 = por %p110, %p111
    %s114 = sadd.s32 %s113, 1
    %p117 = scmp.eq.s32.totalorder %s11, 1
    %p118 = scmp.ne.s32.totalorder %s113, %s115
    %p119 = scmp.eq.s32.totalorder %s11, 0
    %p120 = por %p118, %p119
    %p121 = scmp.ne.s32.totalorder %s113, %s115
    %p122 = scmp.eq.s32.totalorder %s16, 1
    %p123 = por %p121, %p122
    %p124 = scmp.ne.s32.totalorder %s115, %s116
    %p125 = scmp.eq.s32.totalorder %s16, 0
    %p126 = por %p124, %p125
    %p127 = scmp.ne.s32.totalorder %s115, %s116
    %p128 = scmp.eq.s32.totalorder %s17, 1
    %p129 = por %p127, %p128
    %p131 = scmp.ne.s32.totalorder %s116, %s130
    %p132 = scmp.eq.s32.totalorder %s17, 0
    %p133 = por %p131, %p132
    %s134 = ssub.s32 %s11, %s18
    %p135 = scmp.eq.s32.totalorder %s134, 0
    %s137 = sadd.s32 %s136, 1
    %s138 = scalar_select %p135, %s136, %s137
    %p141 = pneg %p135
    %p142 = scmp.eq.s32.totalorder %s11, 1
    %p143 = por %p141, %p142
    %p144 = scmp.ne.s32.totalorder %s136, %s139
    %p145 = scmp.eq.s32.totalorder %s11, 0
    %p146 = por %p144, %p145
    %p147 = scmp.ne.s32.totalorder %s136, %s139
    %p148 = scmp.eq.s32.totalorder %s16, 1
    %p149 = por %p147, %p148
    %p150 = scmp.ne.s32.totalorder %s139, %s140
    %p151 = scmp.eq.s32.totalorder %s16, 0
    %p152 = por %p150, %p151
    %p153 = scmp.ne.s32.totalorder %s139, %s140
    %p154 = scmp.eq.s32.totalorder %s17, 1
    %p155 = por %p153, %p154
    %p157 = scmp.ne.s32.totalorder %s140, %s156
    %p158 = scmp.eq.s32.totalorder %s17, 0
    %p159 = por %p157, %p158
    %p160 = scmp.le.s32.totalorder 1, %s11
    %p161 = scmp.lt.s32.totalorder %s11, 3
    %p162 = pnand %p160, %p161
    %p163 = pneg %p162
    // Predicated region
    $region9: #{tpu_custom_call.1} parent=5 // pred_check
      _
    $region10: #{tpu_custom_call.1} parent=5 // pred_check_branch
      %165 = sbr.rel (%p162) target = $region12
    $region11: #{tpu_custom_call.1} parent=5 // pred_region
      %s166 = ssub.s32 %s11, 1
      // Predicated region
      $region13: #{tpu_custom_call.1} parent=11 // pred_check
        %p167 = pneg %p84
      $region14: #{tpu_custom_call.1} parent=11 // pred_check_branch
        %169 = sbr.rel (%p167) target = $region16
      $region15: #{tpu_custom_call.1} parent=11 // pred_region
        _
      $region16: #{tpu_custom_call.1} parent=11 // pred_fallthru
        _
      // Predicated region
      $region17: #{tpu_custom_call.1} parent=11 // pred_check
        %p170 = pneg %p105
      $region18: #{tpu_custom_call.1} parent=11 // pred_check_branch
        %172 = sbr.rel (%p170) target = $region20
      $region19: #{tpu_custom_call.1} parent=11 // pred_region
        _
      $region20: #{tpu_custom_call.1} parent=11 // pred_fallthru
        _
      // Predicated region
      $region21: #{tpu_custom_call.1} parent=11 // pred_check
        %p173 = pneg %p126
      $region22: #{tpu_custom_call.1} parent=11 // pred_check_branch
        %175 = sbr.rel (%p173) target = $region24
      $region23: #{tpu_custom_call.1} parent=11 // pred_region
        _
      $region24: #{tpu_custom_call.1} parent=11 // pred_fallthru
        _
    $region12: #{tpu_custom_call.1} parent=5 // pred_fallthru
      _
    %p176 = scmp.lt.s32.totalorder %s11, 2
    // Predicated region
    $region25: #{tpu_custom_call.1} parent=5 // pred_check
      %p177 = pneg %p176
    $region26: #{tpu_custom_call.1} parent=5 // pred_check_branch
      %179 = sbr.rel (%p177) target = $region28
    $region27: #{tpu_custom_call.1} parent=5 // pred_region
      // Predicated region
      $region29: #{tpu_custom_call.1} parent=27 // pred_check
        %p180 = pneg %p31
      $region30: #{tpu_custom_call.1} parent=27 // pred_check_branch
        %182 = sbr.rel (%p180) target = $region32
      $region31: #{tpu_custom_call.1} parent=27 // pred_region
        %s183 = smul.u32 64, %s11
        %p184 = scmp.lt.s32.totalorder %s183, 127
        %s185 = scalar_select %p184, %s183, 127
        %s186 = smul.addr %s185, 8
        %s187 = scalar_lea.vmem %s0, %s186
        %s188 = smul.u32 64, %s11
      $region32: #{tpu_custom_call.1} parent=27 // pred_fallthru
        _
      // Predicated region
      $region33: #{tpu_custom_call.1} parent=27 // pred_check
        %p189 = pneg %p57
      $region34: #{tpu_custom_call.1} parent=27 // pred_check_branch
        %191 = sbr.rel (%p189) target = $region36
      $region35: #{tpu_custom_call.1} parent=27 // pred_region
        %s192 = smul.u32 64, %s11
        %p193 = scmp.lt.s32.totalorder %s192, 127
        %s194 = scalar_select %p193, %s192, 127
        %s195 = smul.addr %s194, 8
        %s196 = scalar_lea.vmem %s1, %s195
        %s197 = smul.u32 64, %s11
      $region36: #{tpu_custom_call.1} parent=27 // pred_fallthru
        _
    $region28: #{tpu_custom_call.1} parent=5 // pred_fallthru
      _
    %p198 = scmp.le.s32.totalorder 1, %s11
    %p199 = scmp.lt.s32.totalorder %s11, 3
    %p200 = pnand %p198, %p199
    %p201 = pneg %p200
    // Predicated region
    $region37: #{tpu_custom_call.1} parent=5 // pred_check
      _
    $region38: #{tpu_custom_call.1} parent=5 // pred_check_branch
      %203 = sbr.rel (%p200) target = $region40
    $region39: #{tpu_custom_call.1} parent=5 // pred_region
      %s204 = ssub.s32 %s11, 1
      %s205 = smul.u32 64, %s16
      %p206 = scmp.lt.s32.totalorder %s205, 127
      %s207 = scalar_select %p206, %s205, 127
      %s208 = smul.addr %s207, 8
      %s209 = scalar_lea.vmem %s0, %s208
      %p210 = pneg %p37
      %p211 = pneg %p34
      %s212 = smul.u32 64, %s16
      %p213 = scmp.lt.s32.totalorder %s212, 127
      %s214 = scalar_select %p213, %s212, 127
      %s215 = smul.addr %s214, 8
      %s216 = scalar_lea.vmem %s1, %s215
      %p217 = pneg %p63
      %p218 = pneg %p60
      %p219 = pneg %p84
      %p220 = pneg %p81
      %p221 = pneg %p105
      %p222 = pneg %p102
      %p223 = pneg %p126
      %p224 = pneg %p123
      %p225 = pneg %p152
      %p226 = pneg %p149
      %s227 = smul.u32 64, %s16
      %p228 = scmp.lt.s32.totalorder %s227, 127
      %s229 = scalar_select %p228, %s227, 127
      %s230 = smul.addr %s229, 8
      %s231 = scalar_lea.vmem %s5, %s230
      %s232 = smul.u32 64, %s16
      %p233 = scmp.lt.s32.totalorder %s232, 127
      %s234 = scalar_select %p233, %s232, 127
      %s235 = smul.addr %s234, 8
      %s236 = scalar_lea.vmem %s0, %s235
      %s237 = smul.u32 64, %s16
      %s238 = smul.u32 64, %s16
      %p239 = scmp.lt.s32.totalorder %s238, 127
      %s240 = scalar_select %p239, %s238, 127
      %s241 = smul.addr %s240, 8
      %s242 = scalar_lea.vmem %s1, %s241
      %s243 = smul.u32 64, %s16
      %s244 = smul.u32 64, %s16
      %p245 = scmp.lt.s32.totalorder %s244, 127
      %s246 = scalar_select %p245, %s244, 127
      %s247 = smul.addr %s246, 8
      %s248 = scalar_lea.vmem %s5, %s247
      %s249 = smul.u32 64, %s16
      %v250 = vld [vmem:[%s236] sm:$0xff]
      %v251 = vld [vmem:[%s236 + $0x8] sm:$0xff]
      %v252 = vld [vmem:[%s236 + $0x10] sm:$0xff]
      %v253 = vld [vmem:[%s236 + $0x18] sm:$0xff]
      %v254 = vld [vmem:[%s236 + $0x20] sm:$0xff]
      %v255 = vld [vmem:[%s236 + $0x28] sm:$0xff]
      %v256 = vld [vmem:[%s236 + $0x30] sm:$0xff]
      %v257 = vld [vmem:[%s236 + $0x38] sm:$0xff]
      %v258 = vld [vmem:[%s236 + $0x40] sm:$0xff]
      %v259 = vld [vmem:[%s236 + $0x48] sm:$0xff]
      %v260 = vld [vmem:[%s236 + $0x50] sm:$0xff]
      %v261 = vld [vmem:[%s236 + $0x58] sm:$0xff]
      %v262 = vld [vmem:[%s236 + $0x60] sm:$0xff]
      %v263 = vld [vmem:[%s236 + $0x68] sm:$0xff]
      %v264 = vld [vmem:[%s236 + $0x70] sm:$0xff]
      %v265 = vld [vmem:[%s236 + $0x78] sm:$0xff]
      %v266 = vld [vmem:[%s236 + $0x80] sm:$0xff]
      %v267 = vld [vmem:[%s236 + $0x88] sm:$0xff]
      %v268 = vld [vmem:[%s236 + $0x90] sm:$0xff]
      %v269 = vld [vmem:[%s236 + $0x98] sm:$0xff]
      %v270 = vld [vmem:[%s236 + $0xa0] sm:$0xff]
      %v271 = vld [vmem:[%s236 + $0xa8] sm:$0xff]
      %v272 = vld [vmem:[%s236 + $0xb0] sm:$0xff]
      %v273 = vld [vmem:[%s236 + $0xb8] sm:$0xff]
      %v274 = vld [vmem:[%s236 + $0xc0] sm:$0xff]
      %v275 = vld [vmem:[%s236 + $0xc8] sm:$0xff]
      %v276 = vld [vmem:[%s236 + $0xd0] sm:$0xff]
      %v277 = vld [vmem:[%s236 + $0xd8] sm:$0xff]
      %v278 = vld [vmem:[%s236 + $0xe0] sm:$0xff]
      %v279 = vld [vmem:[%s236 + $0xe8] sm:$0xff]
      %v280 = vld [vmem:[%s236 + $0xf0] sm:$0xff]
      %v281 = vld [vmem:[%s236 + $0xf8] sm:$0xff]
      %v282 = vld [vmem:[%s236 + $0x100] sm:$0xff]
      %v283 = vld [vmem:[%s236 + $0x108] sm:$0xff]
      %v284 = vld [vmem:[%s236 + $0x110] sm:$0xff]
      %v285 = vld [vmem:[%s236 + $0x118] sm:$0xff]
      %v286 = vld [vmem:[%s236 + $0x120] sm:$0xff]
      %v287 = vld [vmem:[%s236 + $0x128] sm:$0xff]
      %v288 = vld [vmem:[%s236 + $0x130] sm:$0xff]
      %v289 = vld [vmem:[%s236 + $0x138] sm:$0xff]
      %v290 = vld [vmem:[%s236 + $0x140] sm:$0xff]
      %v291 = vld [vmem:[%s236 + $0x148] sm:$0xff]
      %v292 = vld [vmem:[%s236 + $0x150] sm:$0xff]
      %v293 = vld [vmem:[%s236 + $0x158] sm:$0xff]
      %v294 = vld [vmem:[%s236 + $0x160] sm:$0xff]
      %v295 = vld [vmem:[%s236 + $0x168] sm:$0xff]
      %v296 = vld [vmem:[%s236 + $0x170] sm:$0xff]
      %v297 = vld [vmem:[%s236 + $0x178] sm:$0xff]
      %v298 = vld [vmem:[%s236 + $0x180] sm:$0xff]
      %v299 = vld [vmem:[%s236 + $0x188] sm:$0xff]
      %v300 = vld [vmem:[%s236 + $0x190] sm:$0xff]
      %v301 = vld [vmem:[%s236 + $0x198] sm:$0xff]
      %v302 = vld [vmem:[%s236 + $0x1a0] sm:$0xff]
      %v303 = vld [vmem:[%s236 + $0x1a8] sm:$0xff]
      %v304 = vld [vmem:[%s236 + $0x1b0] sm:$0xff]
      %v305 = vld [vmem:[%s236 + $0x1b8] sm:$0xff]
      %v306 = vld [vmem:[%s236 + $0x1c0] sm:$0xff]
      %v307 = vld [vmem:[%s236 + $0x1c8] sm:$0xff]
      %v308 = vld [vmem:[%s236 + $0x1d0] sm:$0xff]
      %v309 = vld [vmem:[%s236 + $0x1d8] sm:$0xff]
      %v310 = vld [vmem:[%s236 + $0x1e0] sm:$0xff]
      %v311 = vld [vmem:[%s236 + $0x1e8] sm:$0xff]
      %v312 = vld [vmem:[%s236 + $0x1f0] sm:$0xff]
      %v313 = vld [vmem:[%s236 + $0x1f8] sm:$0xff]
      %v314 = vld [vmem:[%s2] sm:$0xff]
      %v315 = vld [vmem:[%s2 + $0x8] sm:$0xff]
      %v316 = vld [vmem:[%s2 + $0x10] sm:$0xff]
      %v317 = vld [vmem:[%s2 + $0x18] sm:$0xff]
      %v318 = vld [vmem:[%s242] sm:$0xff]
      %v319 = vld [vmem:[%s242 + $0x8] sm:$0xff]
      %v320 = vld [vmem:[%s242 + $0x10] sm:$0xff]
      %v321 = vld [vmem:[%s242 + $0x18] sm:$0xff]
      %v322 = vld [vmem:[%s242 + $0x20] sm:$0xff]
      %v323 = vld [vmem:[%s242 + $0x28] sm:$0xff]
      %v324 = vld [vmem:[%s242 + $0x30] sm:$0xff]
      %v325 = vld [vmem:[%s242 + $0x38] sm:$0xff]
      %v326 = vld [vmem:[%s242 + $0x40] sm:$0xff]
      %v327 = vld [vmem:[%s242 + $0x48] sm:$0xff]
      %v328 = vld [vmem:[%s242 + $0x50] sm:$0xff]
      %v329 = vld [vmem:[%s242 + $0x58] sm:$0xff]
      %v330 = vld [vmem:[%s242 + $0x60] sm:$0xff]
      %v331 = vld [vmem:[%s242 + $0x68] sm:$0xff]
      %v332 = vld [vmem:[%s242 + $0x70] sm:$0xff]
      %v333 = vld [vmem:[%s242 + $0x78] sm:$0xff]
      %v334 = vld [vmem:[%s242 + $0x80] sm:$0xff]
      %v335 = vld [vmem:[%s242 + $0x88] sm:$0xff]
      %v336 = vld [vmem:[%s242 + $0x90] sm:$0xff]
      %v337 = vld [vmem:[%s242 + $0x98] sm:$0xff]
      %v338 = vld [vmem:[%s242 + $0xa0] sm:$0xff]
      %v339 = vld [vmem:[%s242 + $0xa8] sm:$0xff]
      %v340 = vld [vmem:[%s242 + $0xb0] sm:$0xff]
      %v341 = vld [vmem:[%s242 + $0xb8] sm:$0xff]
      %v342 = vld [vmem:[%s242 + $0xc0] sm:$0xff]
      %v343 = vld [vmem:[%s242 + $0xc8] sm:$0xff]
      %v344 = vld [vmem:[%s242 + $0xd0] sm:$0xff]
      %v345 = vld [vmem:[%s242 + $0xd8] sm:$0xff]
      %v346 = vld [vmem:[%s242 + $0xe0] sm:$0xff]
      %v347 = vld [vmem:[%s242 + $0xe8] sm:$0xff]
      %v348 = vld [vmem:[%s242 + $0xf0] sm:$0xff]
      %v349 = vld [vmem:[%s242 + $0xf8] sm:$0xff]
      %v350 = vld [vmem:[%s242 + $0x100] sm:$0xff]
      %v351 = vld [vmem:[%s242 + $0x108] sm:$0xff]
      %v352 = vld [vmem:[%s242 + $0x110] sm:$0xff]
      %v353 = vld [vmem:[%s242 + $0x118] sm:$0xff]
      %v354 = vld [vmem:[%s242 + $0x120] sm:$0xff]
      %v355 = vld [vmem:[%s242 + $0x128] sm:$0xff]
      %v356 = vld [vmem:[%s242 + $0x130] sm:$0xff]
      %v357 = vld [vmem:[%s242 + $0x138] sm:$0xff]
      %v358 = vld [vmem:[%s242 + $0x140] sm:$0xff]
      %v359 = vld [vmem:[%s242 + $0x148] sm:$0xff]
      %v360 = vld [vmem:[%s242 + $0x150] sm:$0xff]
      %v361 = vld [vmem:[%s242 + $0x158] sm:$0xff]
      %v362 = vld [vmem:[%s242 + $0x160] sm:$0xff]
      %v363 = vld [vmem:[%s242 + $0x168] sm:$0xff]
      %v364 = vld [vmem:[%s242 + $0x170] sm:$0xff]
      %v365 = vld [vmem:[%s242 + $0x178] sm:$0xff]
      %v366 = vld [vmem:[%s242 + $0x180] sm:$0xff]
      %v367 = vld [vmem:[%s242 + $0x188] sm:$0xff]
      %v368 = vld [vmem:[%s242 + $0x190] sm:$0xff]
      %v369 = vld [vmem:[%s242 + $0x198] sm:$0xff]
      %v370 = vld [vmem:[%s242 + $0x1a0] sm:$0xff]
      %v371 = vld [vmem:[%s242 + $0x1a8] sm:$0xff]
      %v372 = vld [vmem:[%s242 + $0x1b0] sm:$0xff]
      %v373 = vld [vmem:[%s242 + $0x1b8] sm:$0xff]
      %v374 = vld [vmem:[%s242 + $0x1c0] sm:$0xff]
      %v375 = vld [vmem:[%s242 + $0x1c8] sm:$0xff]
      %v376 = vld [vmem:[%s242 + $0x1d0] sm:$0xff]
      %v377 = vld [vmem:[%s242 + $0x1d8] sm:$0xff]
      %v378 = vld [vmem:[%s242 + $0x1e0] sm:$0xff]
      %v379 = vld [vmem:[%s242 + $0x1e8] sm:$0xff]
      %v380 = vld [vmem:[%s242 + $0x1f0] sm:$0xff]
      %v381 = vld [vmem:[%s242 + $0x1f8] sm:$0xff]
      %v382 = vld [vmem:[%s3] sm:$0xff]
      %v383 = vld [vmem:[%s3 + $0x8] sm:$0xff]
      %v384 = vld [vmem:[%s3 + $0x10] sm:$0xff]
      %v385 = vld [vmem:[%s3 + $0x18] sm:$0xff]
      %vm386 = vcmask 261120
      %v388 = vsel %vm386, %v318, 0
      %v391 = vsel %vm386, %v319, 0
      %v394 = vsel %vm386, %v320, 0
      %v397 = vsel %vm386, %v321, 0
      %v400 = vsel %vm386, %v322, 0
      %v403 = vsel %vm386, %v323, 0
      %v406 = vsel %vm386, %v324, 0
      %v409 = vsel %vm386, %v325, 0
      %v412 = vsel %vm386, %v326, 0
      %v415 = vsel %vm386, %v327, 0
      %v418 = vsel %vm386, %v328, 0
      %v421 = vsel %vm386, %v329, 0
      %v424 = vsel %vm386, %v330, 0
      %v427 = vsel %vm386, %v331, 0
      %v430 = vsel %vm386, %v332, 0
      %v433 = vsel %vm386, %v333, 0
      %v436 = vsel %vm386, %v334, 0
      %v439 = vsel %vm386, %v335, 0
      %v442 = vsel %vm386, %v336, 0
      %v445 = vsel %vm386, %v337, 0
      %v448 = vsel %vm386, %v338, 0
      %v451 = vsel %vm386, %v339, 0
      %v454 = vsel %vm386, %v340, 0
      %v457 = vsel %vm386, %v341, 0
      %v460 = vsel %vm386, %v342, 0
      %v463 = vsel %vm386, %v343, 0
      %v466 = vsel %vm386, %v344, 0
      %v469 = vsel %vm386, %v345, 0
      %v472 = vsel %vm386, %v346, 0
      %v475 = vsel %vm386, %v347, 0
      %v478 = vsel %vm386, %v348, 0
      %v481 = vsel %vm386, %v349, 0
      %v484 = vsel %vm386, %v350, 0
      %v487 = vsel %vm386, %v351, 0
      %v490 = vsel %vm386, %v352, 0
      %v493 = vsel %vm386, %v353, 0
      %v496 = vsel %vm386, %v354, 0
      %v499 = vsel %vm386, %v355, 0
      %v502 = vsel %vm386, %v356, 0
      %v505 = vsel %vm386, %v357, 0
      %v508 = vsel %vm386, %v358, 0
      %v511 = vsel %vm386, %v359, 0
      %v514 = vsel %vm386, %v360, 0
      %v517 = vsel %vm386, %v361, 0
      %v520 = vsel %vm386, %v362, 0
      %v523 = vsel %vm386, %v363, 0
      %v526 = vsel %vm386, %v364, 0
      %v529 = vsel %vm386, %v365, 0
      %v532 = vsel %vm386, %v366, 0
      %v535 = vsel %vm386, %v367, 0
      %v538 = vsel %vm386, %v368, 0
      %v541 = vsel %vm386, %v369, 0
      %v544 = vsel %vm386, %v370, 0
      %v547 = vsel %vm386, %v371, 0
      %v550 = vsel %vm386, %v372, 0
      %v553 = vsel %vm386, %v373, 0
      %v556 = vsel %vm386, %v374, 0
      %v559 = vsel %vm386, %v375, 0
      %v562 = vsel %vm386, %v376, 0
      %v565 = vsel %vm386, %v377, 0
      %v568 = vsel %vm386, %v378, 0
      %v571 = vsel %vm386, %v379, 0
      %v574 = vsel %vm386, %v380, 0
      %v577 = vsel %vm386, %v381, 0
      %579 = vmatprep.subr.mxu0 0.0
      %580 = vmatpush1.msra.mxu0 %v382
      %581 = vmatprep.subr.mxu0 0.0
      %582 = vmatpush1.msra.mxu0 %v383
      %583 = vmatprep.subr.mxu0 0.0
      %584 = vmatpush1.msra.mxu0 %v384
      %585 = vmatprep.subr.mxu0 0.0
      %586 = vmatpush1.msra.mxu0 %v385
      %587 = vmatprep.subr.mxu0 0.0
      %588 = vmatpush1.msra.mxu0 0.0
      %589 = vmatprep.subr.mxu0 0.0
      %590 = vmatpush1.msra.mxu0 0.0
      %591 = vmatprep.subr.mxu0 0.0
      %592 = vmatpush1.msra.mxu0 0.0
      %593 = vmatprep.subr.mxu0 0.0
      %594 = vmatpush1.msra.mxu0 0.0
      %595 = vmatprep.subr.mxu0 0.0
      %596 = vmatpush1.msra.mxu0 0.0
      %597 = vmatprep.subr.mxu0 0.0
      %598 = vmatpush1.msra.mxu0 0.0
      %599 = vmatprep.subr.mxu0 0.0
      %600 = vmatpush1.msra.mxu0 0.0
      %601 = vmatprep.subr.mxu0 0.0
      %602 = vmatpush1.msra.mxu0 0.0
      %603 = vmatprep.subr.mxu0 0.0
      %604 = vmatpush1.msra.mxu0 0.0
      %605 = vmatprep.subr.mxu0 0.0
      %606 = vmatpush1.msra.mxu0 0.0
      %607 = vmatprep.subr.mxu0 0.0
      %608 = vmatpush1.msra.mxu0 0.0
      %609 = vmatprep.subr.mxu0 0.0
      %610 = vmatpush1.msra.mxu0 0.0
      %611 = vmatprep.subr.mxu0 0.0
      %612 = vmatpush1.msra.mxu0 0.0
      %613 = vmatprep.subr.mxu0 0.0
      %614 = vmatpush1.msra.mxu0 0.0
      %615 = vmatprep.subr.mxu0 0.0
      %616 = vmatpush1.msra.mxu0 0.0
      %617 = vmatprep.subr.mxu0 0.0
      %618 = vmatpush1.msra.mxu0 0.0
      %619 = vmatprep.subr.mxu0 0.0
      %620 = vmatpush1.msra.mxu0 0.0
      %621 = vmatprep.subr.mxu0 0.0
      %622 = vmatpush1.msra.mxu0 0.0
      %623 = vmatprep.subr.mxu0 0.0
      %624 = vmatpush1.msra.mxu0 0.0
      %625 = vmatprep.subr.mxu0 0.0
      %626 = vmatpush1.msra.mxu0 0.0
      %627 = vmatprep.subr.mxu0 0.0
      %628 = vmatpush1.msra.mxu0 0.0
      %629 = vmatprep.subr.mxu0 0.0
      %630 = vmatpush1.msra.mxu0 0.0
      %631 = vmatprep.subr.mxu0 0.0
      %632 = vmatpush1.msra.mxu0 0.0
      %633 = vmatprep.subr.mxu0 0.0
      %634 = vmatpush1.msra.mxu0 0.0
      %635 = vmatprep.subr.mxu0 0.0
      %636 = vmatpush1.msra.mxu0 0.0
      %637 = vmatprep.subr.mxu0 0.0
      %638 = vmatpush1.msra.mxu0 0.0
      %639 = vmatprep.subr.mxu0 0.0
      %640 = vmatpush1.msra.mxu0 0.0
      %641 = vmatprep.subr.mxu0 0.0
      %642 = vmatpush1.msra.mxu0 0.0
      %643 = vmatprep.mubr.f32.mxu0 0.0
      %644 = vmatmul.mubr.f32.gmra.mrb[0].mxu0 %v388
      %v645 = vpop.f32.mrb[0].mxu0
      %v646 = vadd.f32 0.0, %v645
      %v647 = vpop.f32.mrb[0].mxu0
      %648 = vmatprep.mubr.f32.mxu0 0.0
      %649 = vmatmul.mubr.f32.gmra.mrb[0].mxu0 %v391
      %v650 = vpop.f32.mrb[0].mxu0
      %v651 = vadd.f32 0.0, %v650
      %v652 = vpop.f32.mrb[0].mxu0
      %653 = vmatprep.mubr.f32.mxu0 0.0
      %654 = vmatmul.mubr.f32.gmra.mrb[0].mxu0 %v394
      %v655 = vpop.f32.mrb[0].mxu0
      %v656 = vadd.f32 0.0, %v655
      %v657 = vpop.f32.mrb[0].mxu0
      %658 = vmatprep.mubr.f32.mxu0 0.0
      %659 = vmatmul.mubr.f32.gmra.mrb[0].mxu0 %v397
      %v660 = vpop.f32.mrb[0].mxu0
      %v661 = vadd.f32 0.0, %v660
      %v662 = vpop.f32.mrb[0].mxu0
      %663 = vmatprep.mubr.f32.mxu0 0.0
      %664 = vmatmul.mubr.f32.gmra.mrb[0].mxu0 %v400
      %v665 = vpop.f32.mrb[0].mxu0
      %v666 = vadd.f32 0.0, %v665
      %v667 = vpop.f32.mrb[0].mxu0
      %668 = vmatprep.mubr.f32.mxu0 0.0
      %669 = vmatmul.mubr.f32.gmra.mrb[0].mxu0 %v403
      %v670 = vpop.f32.mrb[0].mxu0
      %v671 = vadd.f32 0.0, %v670
      %v672 = vpop.f32.mrb[0].mxu0
      %673 = vmatprep.mubr.f32.mxu0 0.0
      %674 = vmatmul.mubr.f32.gmra.mrb[0].mxu0 %v406
      %v675 = vpop.f32.mrb[0].mxu0
      %v676 = vadd.f32 0.0, %v675
      %v677 = vpop.f32.mrb[0].mxu0
      %678 = vmatprep.mubr.f32.mxu0 0.0
      %679 = vmatmul.mubr.f32.gmra.mrb[0].mxu0 %v409
      %v680 = vpop.f32.mrb[0].mxu0
      %v681 = vadd.f32 0.0, %v680
      %v682 = vpop.f32.mrb[0].mxu0
      %683 = vmatprep.mubr.f32.mxu0 0.0
      %684 = vmatmul.mubr.f32.gmra.mrb[0].mxu0 %v412
      %v685 = vpop.f32.mrb[0].mxu0
      %v686 = vadd.f32 0.0, %v685
      %v687 = vpop.f32.mrb[0].mxu0
      %688 = vmatprep.mubr.f32.mxu0 0.0
      %689 = vmatmul.mubr.f32.gmra.mrb[0].mxu0 %v415
      %v690 = vpop.f32.mrb[0].mxu0
      %v691 = vadd.f32 0.0, %v690
      %v692 = vpop.f32.mrb[0].mxu0
      %693 = vmatprep.mubr.f32.mxu0 0.0
      %694 = vmatmul.mubr.f32.gmra.mrb[0].mxu0 %v418
      %v695 = vpop.f32.mrb[0].mxu0
      %v696 = vadd.f32 0.0, %v695
      %v697 = vpop.f32.mrb[0].mxu0
      %698 = vmatprep.mubr.f32.mxu0 0.0
      %699 = vmatmul.mubr.f32.gmra.mrb[0].mxu0 %v421
      %v700 = vpop.f32.mrb[0].mxu0
      %v701 = vadd.f32 0.0, %v700
      %v702 = vpop.f32.mrb[0].mxu0
      %703 = vmatprep.mubr.f32.mxu0 0.0
      %704 = vmatmul.mubr.f32.gmra.mrb[0].mxu0 %v424
      %v705 = vpop.f32.mrb[0].mxu0
      %v706 = vadd.f32 0.0, %v705
      %v707 = vpop.f32.mrb[0].mxu0
      %708 = vmatprep.mubr.f32.mxu0 0.0
      %709 = vmatmul.mubr.f32.gmra.mrb[0].mxu0 %v427
      %v710 = vpop.f32.mrb[0].mxu0
      %v711 = vadd.f32 0.0, %v710
      %v712 = vpop.f32.mrb[0].mxu0
      %713 = vmatprep.mubr.f32.mxu0 0.0
      %714 = vmatmul.mubr.f32.gmra.mrb[0].mxu0 %v430
      %v715 = vpop.f32.mrb[0].mxu0
      %v716 = vadd.f32 0.0, %v715
      %v717 = vpop.f32.mrb[0].mxu0
      %718 = vmatprep.mubr.f32.mxu0 0.0
      %719 = vmatmul.mubr.f32.gmra.mrb[0].mxu0 %v433
      %v720 = vpop.f32.mrb[0].mxu0
      %v721 = vadd.f32 0.0, %v720
      %v722 = vpop.f32.mrb[0].mxu0
      %723 = vmatprep.mubr.f32.mxu0 0.0
      %724 = vmatmul.mubr.f32.gmra.mrb[0].mxu0 %v436
      %v725 = vpop.f32.mrb[0].mxu0
      %v726 = vadd.f32 0.0, %v725
      %v727 = vpop.f32.mrb[0].mxu0
      %728 = vmatprep.mubr.f32.mxu0 0.0
      %729 = vmatmul.mubr.f32.gmra.mrb[0].mxu0 %v439
      %v730 = vpop.f32.mrb[0].mxu0
      %v731 = vadd.f32 0.0, %v730
      %v732 = vpop.f32.mrb[0].mxu0
      %733 = vmatprep.mubr.f32.mxu0 0.0
      %734 = vmatmul.mubr.f32.gmra.mrb[0].mxu0 %v442
      %v735 = vpop.f32.mrb[0].mxu0
      %v736 = vadd.f32 0.0, %v735
      %v737 = vpop.f32.mrb[0].mxu0
      %738 = vmatprep.mubr.f32.mxu0 0.0
      %739 = vmatmul.mubr.f32.gmra.mrb[0].mxu0 %v445
      %v740 = vpop.f32.mrb[0].mxu0
      %v741 = vadd.f32 0.0, %v740
      %v742 = vpop.f32.mrb[0].mxu0
      %743 = vmatprep.mubr.f32.mxu0 0.0
      %744 = vmatmul.mubr.f32.gmra.mrb[0].mxu0 %v448
      %v745 = vpop.f32.mrb[0].mxu0
      %v746 = vadd.f32 0.0, %v745
      %v747 = vpop.f32.mrb[0].mxu0
      %748 = vmatprep.mubr.f32.mxu0 0.0
      %749 = vmatmul.mubr.f32.gmra.mrb[0].mxu0 %v451
      %v750 = vpop.f32.mrb[0].mxu0
      %v751 = vadd.f32 0.0, %v750
      %v752 = vpop.f32.mrb[0].mxu0
      %753 = vmatprep.mubr.f32.mxu0 0.0
      %754 = vmatmul.mubr.f32.gmra.mrb[0].mxu0 %v454
      %v755 = vpop.f32.mrb[0].mxu0
      %v756 = vadd.f32 0.0, %v755
      %v757 = vpop.f32.mrb[0].mxu0
      %758 = vmatprep.mubr.f32.mxu0 0.0
      %759 = vmatmul.mubr.f32.gmra.mrb[0].mxu0 %v457
      %v760 = vpop.f32.mrb[0].mxu0
      %v761 = vadd.f32 0.0, %v760
      %v762 = vpop.f32.mrb[0].mxu0
      %763 = vmatprep.mubr.f32.mxu0 0.0
      %764 = vmatmul.mubr.f32.gmra.mrb[0].mxu0 %v460
      %v765 = vpop.f32.mrb[0].mxu0
      %v766 = vadd.f32 0.0, %v765
      %v767 = vpop.f32.mrb[0].mxu0
      %768 = vmatprep.mubr.f32.mxu0 0.0
      %769 = vmatmul.mubr.f32.gmra.mrb[0].mxu0 %v463
      %v770 = vpop.f32.mrb[0].mxu0
      %v771 = vadd.f32 0.0, %v770
      %v772 = vpop.f32.mrb[0].mxu0
      %773 = vmatprep.mubr.f32.mxu0 0.0
      %774 = vmatmul.mubr.f32.gmra.mrb[0].mxu0 %v466
      %v775 = vpop.f32.mrb[0].mxu0
      %v776 = vadd.f32 0.0, %v775
      %v777 = vpop.f32.mrb[0].mxu0
      %778 = vmatprep.mubr.f32.mxu0 0.0
      %779 = vmatmul.mubr.f32.gmra.mrb[0].mxu0 %v469
      %v780 = vpop.f32.mrb[0].mxu0
      %v781 = vadd.f32 0.0, %v780
      %v782 = vpop.f32.mrb[0].mxu0
      %783 = vmatprep.mubr.f32.mxu0 0.0
      %784 = vmatmul.mubr.f32.gmra.mrb[0].mxu0 %v472
      %v785 = vpop.f32.mrb[0].mxu0
      %v786 = vadd.f32 0.0, %v785
      %v787 = vpop.f32.mrb[0].mxu0
      %788 = vmatprep.mubr.f32.mxu0 0.0
      %789 = vmatmul.mubr.f32.gmra.mrb[0].mxu0 %v475
      %v790 = vpop.f32.mrb[0].mxu0
      %v791 = vadd.f32 0.0, %v790
      %v792 = vpop.f32.mrb[0].mxu0
      %793 = vmatprep.mubr.f32.mxu0 0.0
      %794 = vmatmul.mubr.f32.gmra.mrb[0].mxu0 %v478
      %v795 = vpop.f32.mrb[0].mxu0
      %v796 = vadd.f32 0.0, %v795
      %v797 = vpop.f32.mrb[0].mxu0
      %798 = vmatprep.mubr.f32.mxu0 0.0
      %799 = vmatmul.mubr.f32.gmra.mrb[0].mxu0 %v481
      %v800 = vpop.f32.mrb[0].mxu0
      %v801 = vadd.f32 0.0, %v800
      %v802 = vpop.f32.mrb[0].mxu0
      %803 = vmatprep.mubr.f32.mxu0 0.0
      %804 = vmatmul.mubr.f32.gmra.mrb[0].mxu0 %v484
      %v805 = vpop.f32.mrb[0].mxu0
      %v806 = vadd.f32 0.0, %v805
      %v807 = vpop.f32.mrb[0].mxu0
      %808 = vmatprep.mubr.f32.mxu0 0.0
      %809 = vmatmul.mubr.f32.gmra.mrb[0].mxu0 %v487
      %v810 = vpop.f32.mrb[0].mxu0
      %v811 = vadd.f32 0.0, %v810
      %v812 = vpop.f32.mrb[0].mxu0
      %813 = vmatprep.mubr.f32.mxu0 0.0
      %814 = vmatmul.mubr.f32.gmra.mrb[0].mxu0 %v490
      %v815 = vpop.f32.mrb[0].mxu0
      %v816 = vadd.f32 0.0, %v815
      %v817 = vpop.f32.mrb[0].mxu0
      %818 = vmatprep.mubr.f32.mxu0 0.0
      %819 = vmatmul.mubr.f32.gmra.mrb[0].mxu0 %v493
      %v820 = vpop.f32.mrb[0].mxu0
      %v821 = vadd.f32 0.0, %v820
      %v822 = vpop.f32.mrb[0].mxu0
      %823 = vmatprep.mubr.f32.mxu0 0.0
      %824 = vmatmul.mubr.f32.gmra.mrb[0].mxu0 %v496
      %v825 = vpop.f32.mrb[0].mxu0
      %v826 = vadd.f32 0.0, %v825
      %v827 = vpop.f32.mrb[0].mxu0
      %828 = vmatprep.mubr.f32.mxu0 0.0
      %829 = vmatmul.mubr.f32.gmra.mrb[0].mxu0 %v499
      %v830 = vpop.f32.mrb[0].mxu0
      %v831 = vadd.f32 0.0, %v830
      %v832 = vpop.f32.mrb[0].mxu0
      %833 = vmatprep.mubr.f32.mxu0 0.0
      %834 = vmatmul.mubr.f32.gmra.mrb[0].mxu0 %v502
      %v835 = vpop.f32.mrb[0].mxu0
      %v836 = vadd.f32 0.0, %v835
      %v837 = vpop.f32.mrb[0].mxu0
      %838 = vmatprep.mubr.f32.mxu0 0.0
      %839 = vmatmul.mubr.f32.gmra.mrb[0].mxu0 %v505
      %v840 = vpop.f32.mrb[0].mxu0
      %v841 = vadd.f32 0.0, %v840
      %v842 = vpop.f32.mrb[0].mxu0
      %843 = vmatprep.mubr.f32.mxu0 0.0
      %844 = vmatmul.mubr.f32.gmra.mrb[0].mxu0 %v508
      %v845 = vpop.f32.mrb[0].mxu0
      %v846 = vadd.f32 0.0, %v845
      %v847 = vpop.f32.mrb[0].mxu0
      %848 = vmatprep.mubr.f32.mxu0 0.0
      %849 = vmatmul.mubr.f32.gmra.mrb[0].mxu0 %v511
      %v850 = vpop.f32.mrb[0].mxu0
      %v851 = vadd.f32 0.0, %v850
      %v852 = vpop.f32.mrb[0].mxu0
      %853 = vmatprep.mubr.f32.mxu0 0.0
      %854 = vmatmul.mubr.f32.gmra.mrb[0].mxu0 %v514
      %v855 = vpop.f32.mrb[0].mxu0
      %v856 = vadd.f32 0.0, %v855
      %v857 = vpop.f32.mrb[0].mxu0
      %858 = vmatprep.mubr.f32.mxu0 0.0
      %859 = vmatmul.mubr.f32.gmra.mrb[0].mxu0 %v517
      %v860 = vpop.f32.mrb[0].mxu0
      %v861 = vadd.f32 0.0, %v860
      %v862 = vpop.f32.mrb[0].mxu0
      %863 = vmatprep.mubr.f32.mxu0 0.0
      %864 = vmatmul.mubr.f32.gmra.mrb[0].mxu0 %v520
      %v865 = vpop.f32.mrb[0].mxu0
      %v866 = vadd.f32 0.0, %v865
      %v867 = vpop.f32.mrb[0].mxu0
      %868 = vmatprep.mubr.f32.mxu0 0.0
      %869 = vmatmul.mubr.f32.gmra.mrb[0].mxu0 %v523
      %v870 = vpop.f32.mrb[0].mxu0
      %v871 = vadd.f32 0.0, %v870
      %v872 = vpop.f32.mrb[0].mxu0
      %873 = vmatprep.mubr.f32.mxu0 0.0
      %874 = vmatmul.mubr.f32.gmra.mrb[0].mxu0 %v526
      %v875 = vpop.f32.mrb[0].mxu0
      %v876 = vadd.f32 0.0, %v875
      %v877 = vpop.f32.mrb[0].mxu0
      %878 = vmatprep.mubr.f32.mxu0 0.0
      %879 = vmatmul.mubr.f32.gmra.mrb[0].mxu0 %v529
      %v880 = vpop.f32.mrb[0].mxu0
      %v881 = vadd.f32 0.0, %v880
      %v882 = vpop.f32.mrb[0].mxu0
      %883 = vmatprep.mubr.f32.mxu0 0.0
      %884 = vmatmul.mubr.f32.gmra.mrb[0].mxu0 %v532
      %v885 = vpop.f32.mrb[0].mxu0
      %v886 = vadd.f32 0.0, %v885
      %v887 = vpop.f32.mrb[0].mxu0
      %888 = vmatprep.mubr.f32.mxu0 0.0
      %889 = vmatmul.mubr.f32.gmra.mrb[0].mxu0 %v535
      %v890 = vpop.f32.mrb[0].mxu0
      %v891 = vadd.f32 0.0, %v890
      %v892 = vpop.f32.mrb[0].mxu0
      %893 = vmatprep.mubr.f32.mxu0 0.0
      %894 = vmatmul.mubr.f32.gmra.mrb[0].mxu0 %v538
      %v895 = vpop.f32.mrb[0].mxu0
      %v896 = vadd.f32 0.0, %v895
      %v897 = vpop.f32.mrb[0].mxu0
      %898 = vmatprep.mubr.f32.mxu0 0.0
      %899 = vmatmul.mubr.f32.gmra.mrb[0].mxu0 %v541
      %v900 = vpop.f32.mrb[0].mxu0
      %v901 = vadd.f32 0.0, %v900
      %v902 = vpop.f32.mrb[0].mxu0
      %903 = vmatprep.mubr.f32.mxu0 0.0
      %904 = vmatmul.mubr.f32.gmra.mrb[0].mxu0 %v544
      %v905 = vpop.f32.mrb[0].mxu0
      %v906 = vadd.f32 0.0, %v905
      %v907 = vpop.f32.mrb[0].mxu0
      %908 = vmatprep.mubr.f32.mxu0 0.0
      %909 = vmatmul.mubr.f32.gmra.mrb[0].mxu0 %v547
      %v910 = vpop.f32.mrb[0].mxu0
      %v911 = vadd.f32 0.0, %v910
      %v912 = vpop.f32.mrb[0].mxu0
      %913 = vmatprep.mubr.f32.mxu0 0.0
      %914 = vmatmul.mubr.f32.gmra.mrb[0].mxu0 %v550
      %v915 = vpop.f32.mrb[0].mxu0
      %v916 = vadd.f32 0.0, %v915
      %v917 = vpop.f32.mrb[0].mxu0
      %918 = vmatprep.mubr.f32.mxu0 0.0
      %919 = vmatmul.mubr.f32.gmra.mrb[0].mxu0 %v553
      %v920 = vpop.f32.mrb[0].mxu0
      %v921 = vadd.f32 0.0, %v920
      %v922 = vpop.f32.mrb[0].mxu0
      %923 = vmatprep.mubr.f32.mxu0 0.0
      %924 = vmatmul.mubr.f32.gmra.mrb[0].mxu0 %v556
      %v925 = vpop.f32.mrb[0].mxu0
      %v926 = vadd.f32 0.0, %v925
      %v927 = vpop.f32.mrb[0].mxu0
      %928 = vmatprep.mubr.f32.mxu0 0.0
      %929 = vmatmul.mubr.f32.gmra.mrb[0].mxu0 %v559
      %v930 = vpop.f32.mrb[0].mxu0
      %v931 = vadd.f32 0.0, %v930
      %v932 = vpop.f32.mrb[0].mxu0
      %933 = vmatprep.mubr.f32.mxu0 0.0
      %934 = vmatmul.mubr.f32.gmra.mrb[0].mxu0 %v562
      %v935 = vpop.f32.mrb[0].mxu0
      %v936 = vadd.f32 0.0, %v935
      %v937 = vpop.f32.mrb[0].mxu0
      %938 = vmatprep.mubr.f32.mxu0 0.0
      %939 = vmatmul.mubr.f32.gmra.mrb[0].mxu0 %v565
      %v940 = vpop.f32.mrb[0].mxu0
      %v941 = vadd.f32 0.0, %v940
      %v942 = vpop.f32.mrb[0].mxu0
      %943 = vmatprep.mubr.f32.mxu0 0.0
      %944 = vmatmul.mubr.f32.gmra.mrb[0].mxu0 %v568
      %v945 = vpop.f32.mrb[0].mxu0
      %v946 = vadd.f32 0.0, %v945
      %v947 = vpop.f32.mrb[0].mxu0
      %948 = vmatprep.mubr.f32.mxu0 0.0
      %949 = vmatmul.mubr.f32.gmra.mrb[0].mxu0 %v571
      %v950 = vpop.f32.mrb[0].mxu0
      %v951 = vadd.f32 0.0, %v950
      %v952 = vpop.f32.mrb[0].mxu0
      %953 = vmatprep.mubr.f32.mxu0 0.0
      %954 = vmatmul.mubr.f32.gmra.mrb[0].mxu0 %v574
      %v955 = vpop.f32.mrb[0].mxu0
      %v956 = vadd.f32 0.0, %v955
      %v957 = vpop.f32.mrb[0].mxu0
      %958 = vmatprep.mubr.f32.mxu0 0.0
      %959 = vmatmul.mubr.f32.gmra.mrb[0].mxu0 %v577
      %v960 = vpop.f32.mrb[0].mxu0
      %v961 = vadd.f32 0.0, %v960
      %v962 = vpop.f32.mrb[0].mxu0
      %963 = vdwg.mxu0
      %v965 = vsel %vm386, %v250, 0
      %v968 = vsel %vm386, %v251, 0
      %v971 = vsel %vm386, %v252, 0
      %v974 = vsel %vm386, %v253, 0
      %v977 = vsel %vm386, %v254, 0
      %v980 = vsel %vm386, %v255, 0
      %v983 = vsel %vm386, %v256, 0
      %v986 = vsel %vm386, %v257, 0
      %v989 = vsel %vm386, %v258, 0
      %v992 = vsel %vm386, %v259, 0
      %v995 = vsel %vm386, %v260, 0
      %v998 = vsel %vm386, %v261, 0
      %v1001 = vsel %vm386, %v262, 0
      %v1004 = vsel %vm386, %v263, 0
      %v1007 = vsel %vm386, %v264, 0
      %v1010 = vsel %vm386, %v265, 0
      %v1013 = vsel %vm386, %v266, 0
      %v1016 = vsel %vm386, %v267, 0
      %v1019 = vsel %vm386, %v268, 0
      %v1022 = vsel %vm386, %v269, 0
      %v1025 = vsel %vm386, %v270, 0
      %v1028 = vsel %vm386, %v271, 0
      %v1031 = vsel %vm386, %v272, 0
      %v1034 = vsel %vm386, %v273, 0
      %v1037 = vsel %vm386, %v274, 0
      %v1040 = vsel %vm386, %v275, 0
      %v1043 = vsel %vm386, %v276, 0
      %v1046 = vsel %vm386, %v277, 0
      %v1049 = vsel %vm386, %v278, 0
      %v1052 = vsel %vm386, %v279, 0
      %v1055 = vsel %vm386, %v280, 0
      %v1058 = vsel %vm386, %v281, 0
      %v1061 = vsel %vm386, %v282, 0
      %v1064 = vsel %vm386, %v283, 0
      %v1067 = vsel %vm386, %v284, 0
      %v1070 = vsel %vm386, %v285, 0
      %v1073 = vsel %vm386, %v286, 0
      %v1076 = vsel %vm386, %v287, 0
      %v1079 = vsel %vm386, %v288, 0
      %v1082 = vsel %vm386, %v289, 0
      %v1085 = vsel %vm386, %v290, 0
      %v1088 = vsel %vm386, %v291, 0
      %v1091 = vsel %vm386, %v292, 0
      %v1094 = vsel %vm386, %v293, 0
      %v1097 = vsel %vm386, %v294, 0
      %v1100 = vsel %vm386, %v295, 0
      %v1103 = vsel %vm386, %v296, 0
      %v1106 = vsel %vm386, %v297, 0
      %v1109 = vsel %vm386, %v298, 0
      %v1112 = vsel %vm386, %v299, 0
      %v1115 = vsel %vm386, %v300, 0
      %v1118 = vsel %vm386, %v301, 0
      %v1121 = vsel %vm386, %v302, 0
      %v1124 = vsel %vm386, %v303, 0
      %v1127 = vsel %vm386, %v304, 0
      %v1130 = vsel %vm386, %v305, 0
      %v1133 = vsel %vm386, %v306, 0
      %v1136 = vsel %vm386, %v307, 0
      %v1139 = vsel %vm386, %v308, 0
      %v1142 = vsel %vm386, %v309, 0
      %v1145 = vsel %vm386, %v310, 0
      %v1148 = vsel %vm386, %v311, 0
      %v1151 = vsel %vm386, %v312, 0
      %v1154 = vsel %vm386, %v313, 0
      %1156 = vmatprep.subr.mxu0 0.0
      %1157 = vmatpush1.msra.mxu0 %v314
      %1158 = vmatprep.subr.mxu0 0.0
      %1159 = vmatpush1.msra.mxu0 %v315
      %1160 = vmatprep.subr.mxu0 0.0
      %1161 = vmatpush1.msra.mxu0 %v316
      %1162 = vmatprep.subr.mxu0 0.0
      %1163 = vmatpush1.msra.mxu0 %v317
      %1164 = vmatprep.subr.mxu0 0.0
      %1165 = vmatpush1.msra.mxu0 0.0
      %1166 = vmatprep.subr.mxu0 0.0
      %1167 = vmatpush1.msra.mxu0 0.0
      %1168 = vmatprep.subr.mxu0 0.0
      %1169 = vmatpush1.msra.mxu0 0.0
      %1170 = vmatprep.subr.mxu0 0.0
      %1171 = vmatpush1.msra.mxu0 0.0
      %1172 = vmatprep.subr.mxu0 0.0
      %1173 = vmatpush1.msra.mxu0 0.0
      %1174 = vmatprep.subr.mxu0 0.0
      %1175 = vmatpush1.msra.mxu0 0.0
      %1176 = vmatprep.subr.mxu0 0.0
      %1177 = vmatpush1.msra.mxu0 0.0
      %1178 = vmatprep.subr.mxu0 0.0
      %1179 = vmatpush1.msra.mxu0 0.0
      %1180 = vmatprep.subr.mxu0 0.0
      %1181 = vmatpush1.msra.mxu0 0.0
      %1182 = vmatprep.subr.mxu0 0.0
      %1183 = vmatpush1.msra.mxu0 0.0
      %1184 = vmatprep.subr.mxu0 0.0
      %1185 = vmatpush1.msra.mxu0 0.0
      %1186 = vmatprep.subr.mxu0 0.0
      %1187 = vmatpush1.msra.mxu0 0.0
      %1188 = vmatprep.subr.mxu0 0.0
      %1189 = vmatpush1.msra.mxu0 0.0
      %1190 = vmatprep.subr.mxu0 0.0
      %1191 = vmatpush1.msra.mxu0 0.0
      %1192 = vmatprep.subr.mxu0 0.0
      %1193 = vmatpush1.msra.mxu0 0.0
      %1194 = vmatprep.subr.mxu0 0.0
      %1195 = vmatpush1.msra.mxu0 0.0
      %1196 = vmatprep.subr.mxu0 0.0
      %1197 = vmatpush1.msra.mxu0 0.0
      %1198 = vmatprep.subr.mxu0 0.0
      %1199 = vmatpush1.msra.mxu0 0.0
      %1200 = vmatprep.subr.mxu0 0.0
      %1201 = vmatpush1.msra.mxu0 0.0
      %1202 = vmatprep.subr.mxu0 0.0
      %1203 = vmatpush1.msra.mxu0 0.0
      %1204 = vmatprep.subr.mxu0 0.0
      %1205 = vmatpush1.msra.mxu0 0.0
      %1206 = vmatprep.subr.mxu0 0.0
      %1207 = vmatpush1.msra.mxu0 0.0
      %1208 = vmatprep.subr.mxu0 0.0
      %1209 = vmatpush1.msra.mxu0 0.0
      %1210 = vmatprep.subr.mxu0 0.0
      %1211 = vmatpush1.msra.mxu0 0.0
      %1212 = vmatprep.subr.mxu0 0.0
      %1213 = vmatpush1.msra.mxu0 0.0
      %1214 = vmatprep.subr.mxu0 0.0
      %1215 = vmatpush1.msra.mxu0 0.0
      %1216 = vmatprep.subr.mxu0 0.0
      %1217 = vmatpush1.msra.mxu0 0.0
      %1218 = vmatprep.subr.mxu0 0.0
      %1219 = vmatpush1.msra.mxu0 0.0
      %1220 = vmatprep.mubr.f32.mxu0 0.0
      %1221 = vmatmul.mubr.f32.gmra.mrb[0].mxu0 %v965
      %v1222 = vpop.f32.mrb[0].mxu0
      %v1223 = vadd.f32 %v646, %v1222
      %v1224 = vpop.f32.mrb[0].mxu0
      %1225 = vmatprep.mubr.f32.mxu0 0.0
      %1226 = vmatmul.mubr.f32.gmra.mrb[0].mxu0 %v968
      %v1227 = vpop.f32.mrb[0].mxu0
      %v1228 = vadd.f32 %v651, %v1227
      %v1229 = vpop.f32.mrb[0].mxu0
      %1230 = vmatprep.mubr.f32.mxu0 0.0
      %1231 = vmatmul.mubr.f32.gmra.mrb[0].mxu0 %v971
      %v1232 = vpop.f32.mrb[0].mxu0
      %v1233 = vadd.f32 %v656, %v1232
      %v1234 = vpop.f32.mrb[0].mxu0
      %1235 = vmatprep.mubr.f32.mxu0 0.0
      %1236 = vmatmul.mubr.f32.gmra.mrb[0].mxu0 %v974
      %v1237 = vpop.f32.mrb[0].mxu0
      %v1238 = vadd.f32 %v661, %v1237
      %v1239 = vpop.f32.mrb[0].mxu0
      %1240 = vmatprep.mubr.f32.mxu0 0.0
      %1241 = vmatmul.mubr.f32.gmra.mrb[0].mxu0 %v977
      %v1242 = vpop.f32.mrb[0].mxu0
      %v1243 = vadd.f32 %v666, %v1242
      %v1244 = vpop.f32.mrb[0].mxu0
      %1245 = vmatprep.mubr.f32.mxu0 0.0
      %1246 = vmatmul.mubr.f32.gmra.mrb[0].mxu0 %v980
      %v1247 = vpop.f32.mrb[0].mxu0
      %v1248 = vadd.f32 %v671, %v1247
      %v1249 = vpop.f32.mrb[0].mxu0
      %1250 = vmatprep.mubr.f32.mxu0 0.0
      %1251 = vmatmul.mubr.f32.gmra.mrb[0].mxu0 %v983
      %v1252 = vpop.f32.mrb[0].mxu0
      %v1253 = vadd.f32 %v676, %v1252
      %v1254 = vpop.f32.mrb[0].mxu0
      %1255 = vmatprep.mubr.f32.mxu0 0.0
      %1256 = vmatmul.mubr.f32.gmra.mrb[0].mxu0 %v986
      %v1257 = vpop.f32.mrb[0].mxu0
      %v1258 = vadd.f32 %v681, %v1257
      %v1259 = vpop.f32.mrb[0].mxu0
      %1260 = vmatprep.mubr.f32.mxu0 0.0
      %1261 = vmatmul.mubr.f32.gmra.mrb[0].mxu0 %v989
      %v1262 = vpop.f32.mrb[0].mxu0
      %v1263 = vadd.f32 %v686, %v1262
      %v1264 = vpop.f32.mrb[0].mxu0
      %1265 = vmatprep.mubr.f32.mxu0 0.0
      %1266 = vmatmul.mubr.f32.gmra.mrb[0].mxu0 %v992
      %v1267 = vpop.f32.mrb[0].mxu0
      %v1268 = vadd.f32 %v691, %v1267
      %v1269 = vpop.f32.mrb[0].mxu0
      %1270 = vmatprep.mubr.f32.mxu0 0.0
      %1271 = vmatmul.mubr.f32.gmra.mrb[0].mxu0 %v995
      %v1272 = vpop.f32.mrb[0].mxu0
      %v1273 = vadd.f32 %v696, %v1272
      %v1274 = vpop.f32.mrb[0].mxu0
      %1275 = vmatprep.mubr.f32.mxu0 0.0
      %1276 = vmatmul.mubr.f32.gmra.mrb[0].mxu0 %v998
      %v1277 = vpop.f32.mrb[0].mxu0
      %v1278 = vadd.f32 %v701, %v1277
      %v1279 = vpop.f32.mrb[0].mxu0
      %1280 = vmatprep.mubr.f32.mxu0 0.0
      %1281 = vmatmul.mubr.f32.gmra.mrb[0].mxu0 %v1001
      %v1282 = vpop.f32.mrb[0].mxu0
      %v1283 = vadd.f32 %v706, %v1282
      %v1284 = vpop.f32.mrb[0].mxu0
      %1285 = vmatprep.mubr.f32.mxu0 0.0
      %1286 = vmatmul.mubr.f32.gmra.mrb[0].mxu0 %v1004
      %v1287 = vpop.f32.mrb[0].mxu0
      %v1288 = vadd.f32 %v711, %v1287
      %v1289 = vpop.f32.mrb[0].mxu0
      %1290 = vmatprep.mubr.f32.mxu0 0.0
      %1291 = vmatmul.mubr.f32.gmra.mrb[0].mxu0 %v1007
      %v1292 = vpop.f32.mrb[0].mxu0
      %v1293 = vadd.f32 %v716, %v1292
      %v1294 = vpop.f32.mrb[0].mxu0
      %1295 = vmatprep.mubr.f32.mxu0 0.0
      %1296 = vmatmul.mubr.f32.gmra.mrb[0].mxu0 %v1010
      %v1297 = vpop.f32.mrb[0].mxu0
      %v1298 = vadd.f32 %v721, %v1297
      %v1299 = vpop.f32.mrb[0].mxu0
      %1300 = vmatprep.mubr.f32.mxu0 0.0
      %1301 = vmatmul.mubr.f32.gmra.mrb[0].mxu0 %v1013
      %v1302 = vpop.f32.mrb[0].mxu0
      %v1303 = vadd.f32 %v726, %v1302
      %v1304 = vpop.f32.mrb[0].mxu0
      %1305 = vmatprep.mubr.f32.mxu0 0.0
      %1306 = vmatmul.mubr.f32.gmra.mrb[0].mxu0 %v1016
      %v1307 = vpop.f32.mrb[0].mxu0
      %v1308 = vadd.f32 %v731, %v1307
      %v1309 = vpop.f32.mrb[0].mxu0
      %1310 = vmatprep.mubr.f32.mxu0 0.0
      %1311 = vmatmul.mubr.f32.gmra.mrb[0].mxu0 %v1019
      %v1312 = vpop.f32.mrb[0].mxu0
      %v1313 = vadd.f32 %v736, %v1312
      %v1314 = vpop.f32.mrb[0].mxu0
      %1315 = vmatprep.mubr.f32.mxu0 0.0
      %1316 = vmatmul.mubr.f32.gmra.mrb[0].mxu0 %v1022
      %v1317 = vpop.f32.mrb[0].mxu0
      %v1318 = vadd.f32 %v741, %v1317
      %v1319 = vpop.f32.mrb[0].mxu0
      %1320 = vmatprep.mubr.f32.mxu0 0.0
      %1321 = vmatmul.mubr.f32.gmra.mrb[0].mxu0 %v1025
      %v1322 = vpop.f32.mrb[0].mxu0
      %v1323 = vadd.f32 %v746, %v1322
      %v1324 = vpop.f32.mrb[0].mxu0
      %1325 = vmatprep.mubr.f32.mxu0 0.0
      %1326 = vmatmul.mubr.f32.gmra.mrb[0].mxu0 %v1028
      %v1327 = vpop.f32.mrb[0].mxu0
      %v1328 = vadd.f32 %v751, %v1327
      %v1329 = vpop.f32.mrb[0].mxu0
      %1330 = vmatprep.mubr.f32.mxu0 0.0
      %1331 = vmatmul.mubr.f32.gmra.mrb[0].mxu0 %v1031
      %v1332 = vpop.f32.mrb[0].mxu0
      %v1333 = vadd.f32 %v756, %v1332
      %v1334 = vpop.f32.mrb[0].mxu0
      %1335 = vmatprep.mubr.f32.mxu0 0.0
      %1336 = vmatmul.mubr.f32.gmra.mrb[0].mxu0 %v1034
      %v1337 = vpop.f32.mrb[0].mxu0
      %v1338 = vadd.f32 %v761, %v1337
      %v1339 = vpop.f32.mrb[0].mxu0
      %1340 = vmatprep.mubr.f32.mxu0 0.0
      %1341 = vmatmul.mubr.f32.gmra.mrb[0].mxu0 %v1037
      %v1342 = vpop.f32.mrb[0].mxu0
      %v1343 = vadd.f32 %v766, %v1342
      %v1344 = vpop.f32.mrb[0].mxu0
      %1345 = vmatprep.mubr.f32.mxu0 0.0
      %1346 = vmatmul.mubr.f32.gmra.mrb[0].mxu0 %v1040
      %v1347 = vpop.f32.mrb[0].mxu0
      %v1348 = vadd.f32 %v771, %v1347
      %v1349 = vpop.f32.mrb[0].mxu0
      %1350 = vmatprep.mubr.f32.mxu0 0.0
      %1351 = vmatmul.mubr.f32.gmra.mrb[0].mxu0 %v1043
      %v1352 = vpop.f32.mrb[0].mxu0
      %v1353 = vadd.f32 %v776, %v1352
      %v1354 = vpop.f32.mrb[0].mxu0
      %1355 = vmatprep.mubr.f32.mxu0 0.0
      %1356 = vmatmul.mubr.f32.gmra.mrb[0].mxu0 %v1046
      %v1357 = vpop.f32.mrb[0].mxu0
      %v1358 = vadd.f32 %v781, %v1357
      %v1359 = vpop.f32.mrb[0].mxu0
      %1360 = vmatprep.mubr.f32.mxu0 0.0
      %1361 = vmatmul.mubr.f32.gmra.mrb[0].mxu0 %v1049
      %v1362 = vpop.f32.mrb[0].mxu0
      %v1363 = vadd.f32 %v786, %v1362
      %v1364 = vpop.f32.mrb[0].mxu0
      %1365 = vmatprep.mubr.f32.mxu0 0.0
      %1366 = vmatmul.mubr.f32.gmra.mrb[0].mxu0 %v1052
      %v1367 = vpop.f32.mrb[0].mxu0
      %v1368 = vadd.f32 %v791, %v1367
      %v1369 = vpop.f32.mrb[0].mxu0
      %1370 = vmatprep.mubr.f32.mxu0 0.0
      %1371 = vmatmul.mubr.f32.gmra.mrb[0].mxu0 %v1055
      %v1372 = vpop.f32.mrb[0].mxu0
      %v1373 = vadd.f32 %v796, %v1372
      %v1374 = vpop.f32.mrb[0].mxu0
      %1375 = vmatprep.mubr.f32.mxu0 0.0
      %1376 = vmatmul.mubr.f32.gmra.mrb[0].mxu0 %v1058
      %v1377 = vpop.f32.mrb[0].mxu0
      %v1378 = vadd.f32 %v801, %v1377
      %v1379 = vpop.f32.mrb[0].mxu0
      %1380 = vmatprep.mubr.f32.mxu0 0.0
      %1381 = vmatmul.mubr.f32.gmra.mrb[0].mxu0 %v1061
      %v1382 = vpop.f32.mrb[0].mxu0
      %v1383 = vadd.f32 %v806, %v1382
      %v1384 = vpop.f32.mrb[0].mxu0
      %1385 = vmatprep.mubr.f32.mxu0 0.0
      %1386 = vmatmul.mubr.f32.gmra.mrb[0].mxu0 %v1064
      %v1387 = vpop.f32.mrb[0].mxu0
      %v1388 = vadd.f32 %v811, %v1387
      %v1389 = vpop.f32.mrb[0].mxu0
      %1390 = vmatprep.mubr.f32.mxu0 0.0
      %1391 = vmatmul.mubr.f32.gmra.mrb[0].mxu0 %v1067
      %v1392 = vpop.f32.mrb[0].mxu0
      %v1393 = vadd.f32 %v816, %v1392
      %v1394 = vpop.f32.mrb[0].mxu0
      %1395 = vmatprep.mubr.f32.mxu0 0.0
      %1396 = vmatmul.mubr.f32.gmra.mrb[0].mxu0 %v1070
      %v1397 = vpop.f32.mrb[0].mxu0
      %v1398 = vadd.f32 %v821, %v1397
      %v1399 = vpop.f32.mrb[0].mxu0
      %1400 = vmatprep.mubr.f32.mxu0 0.0
      %1401 = vmatmul.mubr.f32.gmra.mrb[0].mxu0 %v1073
      %v1402 = vpop.f32.mrb[0].mxu0
      %v1403 = vadd.f32 %v826, %v1402
      %v1404 = vpop.f32.mrb[0].mxu0
      %1405 = vmatprep.mubr.f32.mxu0 0.0
      %1406 = vmatmul.mubr.f32.gmra.mrb[0].mxu0 %v1076
      %v1407 = vpop.f32.mrb[0].mxu0
      %v1408 = vadd.f32 %v831, %v1407
      %v1409 = vpop.f32.mrb[0].mxu0
      %1410 = vmatprep.mubr.f32.mxu0 0.0
      %1411 = vmatmul.mubr.f32.gmra.mrb[0].mxu0 %v1079
      %v1412 = vpop.f32.mrb[0].mxu0
      %v1413 = vadd.f32 %v836, %v1412
      %v1414 = vpop.f32.mrb[0].mxu0
      %1415 = vmatprep.mubr.f32.mxu0 0.0
      %1416 = vmatmul.mubr.f32.gmra.mrb[0].mxu0 %v1082
      %v1417 = vpop.f32.mrb[0].mxu0
      %v1418 = vadd.f32 %v841, %v1417
      %v1419 = vpop.f32.mrb[0].mxu0
      %1420 = vmatprep.mubr.f32.mxu0 0.0
      %1421 = vmatmul.mubr.f32.gmra.mrb[0].mxu0 %v1085
      %v1422 = vpop.f32.mrb[0].mxu0
      %v1423 = vadd.f32 %v846, %v1422
      %v1424 = vpop.f32.mrb[0].mxu0
      %1425 = vmatprep.mubr.f32.mxu0 0.0
      %1426 = vmatmul.mubr.f32.gmra.mrb[0].mxu0 %v1088
      %v1427 = vpop.f32.mrb[0].mxu0
      %v1428 = vadd.f32 %v851, %v1427
      %v1429 = vpop.f32.mrb[0].mxu0
      %1430 = vmatprep.mubr.f32.mxu0 0.0
      %1431 = vmatmul.mubr.f32.gmra.mrb[0].mxu0 %v1091
      %v1432 = vpop.f32.mrb[0].mxu0
      %v1433 = vadd.f32 %v856, %v1432
      %v1434 = vpop.f32.mrb[0].mxu0
      %1435 = vmatprep.mubr.f32.mxu0 0.0
      %1436 = vmatmul.mubr.f32.gmra.mrb[0].mxu0 %v1094
      %v1437 = vpop.f32.mrb[0].mxu0
      %v1438 = vadd.f32 %v861, %v1437
      %v1439 = vpop.f32.mrb[0].mxu0
      %1440 = vmatprep.mubr.f32.mxu0 0.0
      %1441 = vmatmul.mubr.f32.gmra.mrb[0].mxu0 %v1097
      %v1442 = vpop.f32.mrb[0].mxu0
      %v1443 = vadd.f32 %v866, %v1442
      %v1444 = vpop.f32.mrb[0].mxu0
      %1445 = vmatprep.mubr.f32.mxu0 0.0
      %1446 = vmatmul.mubr.f32.gmra.mrb[0].mxu0 %v1100
      %v1447 = vpop.f32.mrb[0].mxu0
      %v1448 = vadd.f32 %v871, %v1447
      %v1449 = vpop.f32.mrb[0].mxu0
      %1450 = vmatprep.mubr.f32.mxu0 0.0
      %1451 = vmatmul.mubr.f32.gmra.mrb[0].mxu0 %v1103
      %v1452 = vpop.f32.mrb[0].mxu0
      %v1453 = vadd.f32 %v876, %v1452
      %v1454 = vpop.f32.mrb[0].mxu0
      %1455 = vmatprep.mubr.f32.mxu0 0.0
      %1456 = vmatmul.mubr.f32.gmra.mrb[0].mxu0 %v1106
      %v1457 = vpop.f32.mrb[0].mxu0
      %v1458 = vadd.f32 %v881, %v1457
      %v1459 = vpop.f32.mrb[0].mxu0
      %1460 = vmatprep.mubr.f32.mxu0 0.0
      %1461 = vmatmul.mubr.f32.gmra.mrb[0].mxu0 %v1109
      %v1462 = vpop.f32.mrb[0].mxu0
      %v1463 = vadd.f32 %v886, %v1462
      %v1464 = vpop.f32.mrb[0].mxu0
      %1465 = vmatprep.mubr.f32.mxu0 0.0
      %1466 = vmatmul.mubr.f32.gmra.mrb[0].mxu0 %v1112
      %v1467 = vpop.f32.mrb[0].mxu0
      %v1468 = vadd.f32 %v891, %v1467
      %v1469 = vpop.f32.mrb[0].mxu0
      %1470 = vmatprep.mubr.f32.mxu0 0.0
      %1471 = vmatmul.mubr.f32.gmra.mrb[0].mxu0 %v1115
      %v1472 = vpop.f32.mrb[0].mxu0
      %v1473 = vadd.f32 %v896, %v1472
      %v1474 = vpop.f32.mrb[0].mxu0
      %1475 = vmatprep.mubr.f32.mxu0 0.0
      %1476 = vmatmul.mubr.f32.gmra.mrb[0].mxu0 %v1118
      %v1477 = vpop.f32.mrb[0].mxu0
      %v1478 = vadd.f32 %v901, %v1477
      %v1479 = vpop.f32.mrb[0].mxu0
      %1480 = vmatprep.mubr.f32.mxu0 0.0
      %1481 = vmatmul.mubr.f32.gmra.mrb[0].mxu0 %v1121
      %v1482 = vpop.f32.mrb[0].mxu0
      %v1483 = vadd.f32 %v906, %v1482
      %v1484 = vpop.f32.mrb[0].mxu0
      %1485 = vmatprep.mubr.f32.mxu0 0.0
      %1486 = vmatmul.mubr.f32.gmra.mrb[0].mxu0 %v1124
      %v1487 = vpop.f32.mrb[0].mxu0
      %v1488 = vadd.f32 %v911, %v1487
      %v1489 = vpop.f32.mrb[0].mxu0
      %1490 = vmatprep.mubr.f32.mxu0 0.0
      %1491 = vmatmul.mubr.f32.gmra.mrb[0].mxu0 %v1127
      %v1492 = vpop.f32.mrb[0].mxu0
      %v1493 = vadd.f32 %v916, %v1492
      %v1494 = vpop.f32.mrb[0].mxu0
      %1495 = vmatprep.mubr.f32.mxu0 0.0
      %1496 = vmatmul.mubr.f32.gmra.mrb[0].mxu0 %v1130
      %v1497 = vpop.f32.mrb[0].mxu0
      %v1498 = vadd.f32 %v921, %v1497
      %v1499 = vpop.f32.mrb[0].mxu0
      %1500 = vmatprep.mubr.f32.mxu0 0.0
      %1501 = vmatmul.mubr.f32.gmra.mrb[0].mxu0 %v1133
      %v1502 = vpop.f32.mrb[0].mxu0
      %v1503 = vadd.f32 %v926, %v1502
      %v1504 = vpop.f32.mrb[0].mxu0
      %1505 = vmatprep.mubr.f32.mxu0 0.0
      %1506 = vmatmul.mubr.f32.gmra.mrb[0].mxu0 %v1136
      %v1507 = vpop.f32.mrb[0].mxu0
      %v1508 = vadd.f32 %v931, %v1507
      %v1509 = vpop.f32.mrb[0].mxu0
      %1510 = vmatprep.mubr.f32.mxu0 0.0
      %1511 = vmatmul.mubr.f32.gmra.mrb[0].mxu0 %v1139
      %v1512 = vpop.f32.mrb[0].mxu0
      %v1513 = vadd.f32 %v936, %v1512
      %v1514 = vpop.f32.mrb[0].mxu0
      %1515 = vmatprep.mubr.f32.mxu0 0.0
      %1516 = vmatmul.mubr.f32.gmra.mrb[0].mxu0 %v1142
      %v1517 = vpop.f32.mrb[0].mxu0
      %v1518 = vadd.f32 %v941, %v1517
      %v1519 = vpop.f32.mrb[0].mxu0
      %1520 = vmatprep.mubr.f32.mxu0 0.0
      %1521 = vmatmul.mubr.f32.gmra.mrb[0].mxu0 %v1145
      %v1522 = vpop.f32.mrb[0].mxu0
      %v1523 = vadd.f32 %v946, %v1522
      %v1524 = vpop.f32.mrb[0].mxu0
      %1525 = vmatprep.mubr.f32.mxu0 0.0
      %1526 = vmatmul.mubr.f32.gmra.mrb[0].mxu0 %v1148
      %v1527 = vpop.f32.mrb[0].mxu0
      %v1528 = vadd.f32 %v951, %v1527
      %v1529 = vpop.f32.mrb[0].mxu0
      %1530 = vmatprep.mubr.f32.mxu0 0.0
      %1531 = vmatmul.mubr.f32.gmra.mrb[0].mxu0 %v1151
      %v1532 = vpop.f32.mrb[0].mxu0
      %v1533 = vadd.f32 %v956, %v1532
      %v1534 = vpop.f32.mrb[0].mxu0
      %1535 = vmatprep.mubr.f32.mxu0 0.0
      %1536 = vmatmul.mubr.f32.gmra.mrb[0].mxu0 %v1154
      %v1537 = vpop.f32.mrb[0].mxu0
      %v1538 = vadd.f32 %v961, %v1537
      %v1539 = vpop.f32.mrb[0].mxu0
      %1540 = vdwg.mxu0
      %v1541 = vld [vmem:[%s4] sm:$0x1]
      %v1543 = vlaneseq
      %v1544 = vshrl.u32 %v1543, 7
      %v1545 = vsub.s32 0, %v1544
      %v1546 = vrot.slane %v1541, %v1545
      %v1548 = vadd.f32 %v1223, %v1546
      %v1549 = vadd.f32 %v1228, %v1546
      %v1550 = vadd.f32 %v1233, %v1546
      %v1551 = vadd.f32 %v1238, %v1546
      %v1552 = vadd.f32 %v1243, %v1546
      %v1553 = vadd.f32 %v1248, %v1546
      %v1554 = vadd.f32 %v1253, %v1546
      %v1555 = vadd.f32 %v1258, %v1546
      %v1556 = vadd.f32 %v1263, %v1546
      %v1557 = vadd.f32 %v1268, %v1546
      %v1558 = vadd.f32 %v1273, %v1546
      %v1559 = vadd.f32 %v1278, %v1546
      %v1560 = vadd.f32 %v1283, %v1546
      %v1561 = vadd.f32 %v1288, %v1546
      %v1562 = vadd.f32 %v1293, %v1546
      %v1563 = vadd.f32 %v1298, %v1546
      %v1564 = vadd.f32 %v1303, %v1546
      %v1565 = vadd.f32 %v1308, %v1546
      %v1566 = vadd.f32 %v1313, %v1546
      %v1567 = vadd.f32 %v1318, %v1546
      %v1568 = vadd.f32 %v1323, %v1546
      %v1569 = vadd.f32 %v1328, %v1546
      %v1570 = vadd.f32 %v1333, %v1546
      %v1571 = vadd.f32 %v1338, %v1546
      %v1572 = vadd.f32 %v1343, %v1546
      %v1573 = vadd.f32 %v1348, %v1546
      %v1574 = vadd.f32 %v1353, %v1546
      %v1575 = vadd.f32 %v1358, %v1546
      %v1576 = vadd.f32 %v1363, %v1546
      %v1577 = vadd.f32 %v1368, %v1546
      %v1578 = vadd.f32 %v1373, %v1546
      %v1579 = vadd.f32 %v1378, %v1546
      %v1580 = vadd.f32 %v1383, %v1546
      %v1581 = vadd.f32 %v1388, %v1546
      %v1582 = vadd.f32 %v1393, %v1546
      %v1583 = vadd.f32 %v1398, %v1546
      %v1584 = vadd.f32 %v1403, %v1546
      %v1585 = vadd.f32 %v1408, %v1546
      %v1586 = vadd.f32 %v1413, %v1546
      %v1587 = vadd.f32 %v1418, %v1546
      %v1588 = vadd.f32 %v1423, %v1546
      %v1589 = vadd.f32 %v1428, %v1546
      %v1590 = vadd.f32 %v1433, %v1546
      %v1591 = vadd.f32 %v1438, %v1546
      %v1592 = vadd.f32 %v1443, %v1546
      %v1593 = vadd.f32 %v1448, %v1546
      %v1594 = vadd.f32 %v1453, %v1546
      %v1595 = vadd.f32 %v1458, %v1546
      %v1596 = vadd.f32 %v1463, %v1546
      %v1597 = vadd.f32 %v1468, %v1546
      %v1598 = vadd.f32 %v1473, %v1546
      %v1599 = vadd.f32 %v1478, %v1546
      %v1600 = vadd.f32 %v1483, %v1546
      %v1601 = vadd.f32 %v1488, %v1546
      %v1602 = vadd.f32 %v1493, %v1546
      %v1603 = vadd.f32 %v1498, %v1546
      %v1604 = vadd.f32 %v1503, %v1546
      %v1605 = vadd.f32 %v1508, %v1546
      %v1606 = vadd.f32 %v1513, %v1546
      %v1607 = vadd.f32 %v1518, %v1546
      %v1608 = vadd.f32 %v1523, %v1546
      %v1609 = vadd.f32 %v1528, %v1546
      %v1610 = vadd.f32 %v1533, %v1546
      %v1611 = vadd.f32 %v1538, %v1546
      %vm1612 = vcmask 64512
      %1613 = vst.msk [vmem:[%s248] sm:$0xff] %vm1612, %v1548
      %1614 = vst.msk [vmem:[%s248 + $0x8] sm:$0xff] %vm1612, %v1549
      %1615 = vst.msk [vmem:[%s248 + $0x10] sm:$0xff] %vm1612, %v1550
      %1616 = vst.msk [vmem:[%s248 + $0x18] sm:$0xff] %vm1612, %v1551
      %1617 = vst.msk [vmem:[%s248 + $0x20] sm:$0xff] %vm1612, %v1552
      %1618 = vst.msk [vmem:[%s248 + $0x28] sm:$0xff] %vm1612, %v1553
      %1619 = vst.msk [vmem:[%s248 + $0x30] sm:$0xff] %vm1612, %v1554
      %1620 = vst.msk [vmem:[%s248 + $0x38] sm:$0xff] %vm1612, %v1555
      %1621 = vst.msk [vmem:[%s248 + $0x40] sm:$0xff] %vm1612, %v1556
      %1622 = vst.msk [vmem:[%s248 + $0x48] sm:$0xff] %vm1612, %v1557
      %1623 = vst.msk [vmem:[%s248 + $0x50] sm:$0xff] %vm1612, %v1558
      %1624 = vst.msk [vmem:[%s248 + $0x58] sm:$0xff] %vm1612, %v1559
      %1625 = vst.msk [vmem:[%s248 + $0x60] sm:$0xff] %vm1612, %v1560
      %1626 = vst.msk [vmem:[%s248 + $0x68] sm:$0xff] %vm1612, %v1561
      %1627 = vst.msk [vmem:[%s248 + $0x70] sm:$0xff] %vm1612, %v1562
      %1628 = vst.msk [vmem:[%s248 + $0x78] sm:$0xff] %vm1612, %v1563
      %1629 = vst.msk [vmem:[%s248 + $0x80] sm:$0xff] %vm1612, %v1564
      %1630 = vst.msk [vmem:[%s248 + $0x88] sm:$0xff] %vm1612, %v1565
      %1631 = vst.msk [vmem:[%s248 + $0x90] sm:$0xff] %vm1612, %v1566
      %1632 = vst.msk [vmem:[%s248 + $0x98] sm:$0xff] %vm1612, %v1567
      %1633 = vst.msk [vmem:[%s248 + $0xa0] sm:$0xff] %vm1612, %v1568
      %1634 = vst.msk [vmem:[%s248 + $0xa8] sm:$0xff] %vm1612, %v1569
      %1635 = vst.msk [vmem:[%s248 + $0xb0] sm:$0xff] %vm1612, %v1570
      %1636 = vst.msk [vmem:[%s248 + $0xb8] sm:$0xff] %vm1612, %v1571
      %1637 = vst.msk [vmem:[%s248 + $0xc0] sm:$0xff] %vm1612, %v1572
      %1638 = vst.msk [vmem:[%s248 + $0xc8] sm:$0xff] %vm1612, %v1573
      %1639 = vst.msk [vmem:[%s248 + $0xd0] sm:$0xff] %vm1612, %v1574
      %1640 = vst.msk [vmem:[%s248 + $0xd8] sm:$0xff] %vm1612, %v1575
      %1641 = vst.msk [vmem:[%s248 + $0xe0] sm:$0xff] %vm1612, %v1576
      %1642 = vst.msk [vmem:[%s248 + $0xe8] sm:$0xff] %vm1612, %v1577
      %1643 = vst.msk [vmem:[%s248 + $0xf0] sm:$0xff] %vm1612, %v1578
      %1644 = vst.msk [vmem:[%s248 + $0xf8] sm:$0xff] %vm1612, %v1579
      %1645 = vst.msk [vmem:[%s248 + $0x100] sm:$0xff] %vm1612, %v1580
      %1646 = vst.msk [vmem:[%s248 + $0x108] sm:$0xff] %vm1612, %v1581
      %1647 = vst.msk [vmem:[%s248 + $0x110] sm:$0xff] %vm1612, %v1582
      %1648 = vst.msk [vmem:[%s248 + $0x118] sm:$0xff] %vm1612, %v1583
      %1649 = vst.msk [vmem:[%s248 + $0x120] sm:$0xff] %vm1612, %v1584
      %1650 = vst.msk [vmem:[%s248 + $0x128] sm:$0xff] %vm1612, %v1585
      %1651 = vst.msk [vmem:[%s248 + $0x130] sm:$0xff] %vm1612, %v1586
      %1652 = vst.msk [vmem:[%s248 + $0x138] sm:$0xff] %vm1612, %v1587
      %1653 = vst.msk [vmem:[%s248 + $0x140] sm:$0xff] %vm1612, %v1588
      %1654 = vst.msk [vmem:[%s248 + $0x148] sm:$0xff] %vm1612, %v1589
      %1655 = vst.msk [vmem:[%s248 + $0x150] sm:$0xff] %vm1612, %v1590
      %1656 = vst.msk [vmem:[%s248 + $0x158] sm:$0xff] %vm1612, %v1591
      %1657 = vst.msk [vmem:[%s248 + $0x160] sm:$0xff] %vm1612, %v1592
      %1658 = vst.msk [vmem:[%s248 + $0x168] sm:$0xff] %vm1612, %v1593
      %1659 = vst.msk [vmem:[%s248 + $0x170] sm:$0xff] %vm1612, %v1594
      %1660 = vst.msk [vmem:[%s248 + $0x178] sm:$0xff] %vm1612, %v1595
      %1661 = vst.msk [vmem:[%s248 + $0x180] sm:$0xff] %vm1612, %v1596
      %1662 = vst.msk [vmem:[%s248 + $0x188] sm:$0xff] %vm1612, %v1597
      %1663 = vst.msk [vmem:[%s248 + $0x190] sm:$0xff] %vm1612, %v1598
      %1664 = vst.msk [vmem:[%s248 + $0x198] sm:$0xff] %vm1612, %v1599
      %1665 = vst.msk [vmem:[%s248 + $0x1a0] sm:$0xff] %vm1612, %v1600
      %1666 = vst.msk [vmem:[%s248 + $0x1a8] sm:$0xff] %vm1612, %v1601
      %1667 = vst.msk [vmem:[%s248 + $0x1b0] sm:$0xff] %vm1612, %v1602
      %1668 = vst.msk [vmem:[%s248 + $0x1b8] sm:$0xff] %vm1612, %v1603
      %1669 = vst.msk [vmem:[%s248 + $0x1c0] sm:$0xff] %vm1612, %v1604
      %1670 = vst.msk [vmem:[%s248 + $0x1c8] sm:$0xff] %vm1612, %v1605
      %1671 = vst.msk [vmem:[%s248 + $0x1d0] sm:$0xff] %vm1612, %v1606
      %1672 = vst.msk [vmem:[%s248 + $0x1d8] sm:$0xff] %vm1612, %v1607
      %1673 = vst.msk [vmem:[%s248 + $0x1e0] sm:$0xff] %vm1612, %v1608
      %1674 = vst.msk [vmem:[%s248 + $0x1e8] sm:$0xff] %vm1612, %v1609
      %1675 = vst.msk [vmem:[%s248 + $0x1f0] sm:$0xff] %vm1612, %v1610
      %1676 = vst.msk [vmem:[%s248 + $0x1f8] sm:$0xff] %vm1612, %v1611
      %s1677 = smul.u32 64, %s16
      %p1678 = scmp.lt.s32.totalorder %s1677, 127
      %s1679 = scalar_select %p1678, %s1677, 127
      %s1680 = smul.addr %s1679, 8
      %s1681 = scalar_lea.vmem %s5, %s1680
      // Predicated region
      $region41: #{tpu_custom_call.1} parent=39 // pred_check
        %p1682 = pneg %p149
      $region42: #{tpu_custom_call.1} parent=39 // pred_check_branch
        %1684 = sbr.rel (%p1682) target = $region44
      $region43: #{tpu_custom_call.1} parent=39 // pred_region
        %s1685 = smul.u32 64, %s16
      $region44: #{tpu_custom_call.1} parent=39 // pred_fallthru
        _
    $region40: #{tpu_custom_call.1} parent=5 // pred_fallthru
      _
    %p1686 = scmp.le.s32.totalorder 2, %s11
    // Predicated region
    $region45: #{tpu_custom_call.1} parent=5 // pred_check
      %p1687 = pneg %p1686
    $region46: #{tpu_custom_call.1} parent=5 // pred_check_branch
      %1689 = sbr.rel (%p1687) target = $region48
    $region47: #{tpu_custom_call.1} parent=5 // pred_region
      %s1690 = ssub.s32 %s11, 2
      // Predicated region
      $region49: #{tpu_custom_call.1} parent=47 // pred_check
        %p1691 = pneg %p155
      $region50: #{tpu_custom_call.1} parent=47 // pred_check_branch
        %1693 = sbr.rel (%p1691) target = $region52
      $region51: #{tpu_custom_call.1} parent=47 // pred_region
        %s1694 = smul.u32 64, %s17
        %p1695 = scmp.lt.s32.totalorder %s1694, 127
        %s1696 = scalar_select %p1695, %s1694, 127
        %s1697 = smul.addr %s1696, 8
        %s1698 = scalar_lea.vmem %s5, %s1697
      $region52: #{tpu_custom_call.1} parent=47 // pred_fallthru
        _
    $region48: #{tpu_custom_call.1} parent=5 // pred_fallthru
      _
  $region6: #{tpu_custom_call.1} parent=0 // loop_footer
    %s15 = sadd.s32 1, %s11
  $region7: #{tpu_custom_call.1} parent=0 // loop_footer_branch
    %10 = sbr.rel target = $region3
  $region8: #{tpu_custom_call.1} parent=0 // loop_exit
    _

</llo_original>
